<compile_context>
chip_gen: v7x
topology: tpu7x:2x2x1
jax: 0.10.0
libtpu: 0.0.40
codegen_flags: <defaults>
</compile_context>

<pallas_src>
import jax
import jax.numpy as jnp
from jax import lax
from jax.experimental import pallas as pl
from jax.experimental.pallas import tpu as pltpu


LANE = 128  # TPU lane width


def acnet_kernel(x_ref, h0_ref, c0_ref, wih_ref, whh_ref, b_ref,
                 wheads_ref, bheads_ref, out_ref):
    seq = x_ref.shape[0]
    H = h0_ref.shape[1]            # native hidden size (32); 4*H == 128 lanes

    # ---- Hoisted input projection: done once for the whole sequence. ----
    # (seq, D) @ (D, 4H) + (1, 4H) -> (seq, 4H); packed gate order is [i, f, o, g].
    pre = jnp.dot(x_ref[...], wih_ref[...],
                  preferred_element_type=jnp.float32) + b_ref[...]
    # Pre-slice the per-step rows so the sublane extracts are issued off the
    # serial recurrence chain.
    pre_rows = [pre[t:t + 1, :] for t in range(seq)]

    # W_hh^T is one (H, 4H) = (32, 128) tile -> 4 vregs, cheap to keep resident
    # across all unrolled steps (no vreg-pressure cliff).
    whh = whh_ref[...]
    h = h0_ref[...]                # (1, H)
    c = c0_ref[...]                # (1, H)

    # Register-resident lstm_out (no VMEM scratch, no masked sublane stores).
    lstm_out = jnp.zeros((seq, H), jnp.float32)
    row_idx = lax.broadcasted_iota(jnp.int32, (seq, H), 0)

    # ---- Fully unrolled recurrence (seq is a compile-time constant). ----
    # TODO(synk): the module hardcodes batch_size=1, so this stays a pure latency
    # chain; real throughput would require a batch dimension on the sublane axis
    # (and a batch-parallel grid across v7x's two TensorCores).
    for t in range(seq):
        gates = pre_rows[t] + jnp.dot(h, whh,
                                      preferred_element_type=jnp.float32)
        sig = jax.nn.sigmoid(gates[:, 0:3 * H])   # [i | f | o] in one EUP region
        i_g = sig[:, 0 * H:1 * H]
        f_g = sig[:, 1 * H:2 * H]
        o_g = sig[:, 2 * H:3 * H]
        g_g = jnp.tanh(gates[:, 3 * H:4 * H])
        c = f_g * c + i_g * g_g
        h = o_g * jnp.tanh(c)
        # Merge h_t into row t of the register-resident lstm_out (cheap VPU
        # select, not on the h/c dependency chain).
        lstm_out = jnp.where(row_idx == t,
                             jnp.broadcast_to(h, (seq, H)), lstm_out)

    # ---- Fused actor/critic heads: one lane-dense matmul + one dense store. ----
    # Columns of wheads: [w_a0 - w_a1, w_a1 - w_a0, w_v, 0...]  so that
    #   col0 -> l0 - l1, col1 -> l1 - l0, col2 -> v.
    # 2-class softmax == sigmoid of the logit difference (exact).
    raw = jnp.dot(lstm_out, wheads_ref[...],
                  preferred_element_type=jnp.float32) + bheads_ref[...]
    lane = lax.broadcasted_iota(jnp.int32, raw.shape, 1)
    out_ref[...] = jnp.where(lane < 2, jax.nn.sigmoid(raw), raw)


def prepare_params(h0, c0, w_ih, w_hh, b_ih, b_hh, w_a, b_a, w_v, b_v):
    """One-time weight packing (NOT in the per-call jitted path).

    PyTorch packs LSTM gates as [i, f, g, o]; repack to [i, f, o, g] so the three
    sigmoid gates are contiguous lanes.  With H = 32, 4*H = 128 so the whole gate
    block is exactly one lane-dense vreg row and W_hh^T is a single MXU tile.
    """
    H = h0.shape[1]
    assert 4 * H == LANE, "kernel assumes 4*hidden_size == 128 lanes"
    perm = jnp.concatenate([jnp.arange(0, H), jnp.arange(H, 2 * H),
                            jnp.arange(3 * H, 4 * H), jnp.arange(2 * H, 3 * H)])

    wih_p = w_ih.T.astype(jnp.float32)[:, perm]                  # (D, 4H)
    whh_p = w_hh.T.astype(jnp.float32)[:, perm]                  # (H, 4H)
    bias_p = (b_ih + b_hh).astype(jnp.float32)[perm][None, :]    # (1, 4H)

    h0_p = h0.astype(jnp.float32)                                # (1, H)
    c0_p = c0.astype(jnp.float32)                                # (1, H)

    # Fused head weights: columns [l0-l1, l1-l0, v, 0...]; tail columns are
    # explicit zeros by construction (no fragile padding invariant).
    w_diff = (w_a[0] - w_a[1]).astype(jnp.float32)               # (H,)
    b_diff = (b_a[0] - b_a[1]).astype(jnp.float32)
    wheads = jnp.zeros((H, LANE), jnp.float32)
    wheads = wheads.at[:, 0].set(w_diff)
    wheads = wheads.at[:, 1].set(-w_diff)
    wheads = wheads.at[:, 2].set(w_v[0].astype(jnp.float32))
    bheads = jnp.zeros((1, LANE), jnp.float32)
    bheads = bheads.at[0, 0].set(b_diff)
    bheads = bheads.at[0, 1].set(-b_diff)
    bheads = bheads.at[0, 2].set(b_v[0].astype(jnp.float32))

    return (h0_p, c0_p, wih_p, whh_p, bias_p, wheads, bheads)


@jax.jit
def acnet_forward(x, h0_p, c0_p, wih_p, whh_p, bias_p, wheads, bheads):
    """x: (seq, input_size). Packed/reordered params from prepare_params()."""
    seq = x.shape[0]
    vmem = pl.BlockSpec(memory_space=pltpu.MemorySpace.VMEM)

    out = pl.pallas_call(
        acnet_kernel,
        out_shape=jax.ShapeDtypeStruct((seq, LANE), jnp.float32),
        in_specs=[vmem] * 8,
        out_specs=vmem,
        compiler_params=pltpu.CompilerParams(
            # Whole problem (inputs + weights + output) is < 100 KiB; a small
            # explicit budget is safe on every generation incl. v7x (64 MiB VMEM).
            vmem_limit_bytes=4 * 1024 * 1024,
        ),
    )(x, h0_p, c0_p, wih_p, whh_p, bias_p, wheads, bheads)

    actions = out[:, 0:2]   # softmax(la(lstm_out), dim=1)
    v = out[:, 2:3]         # lv(lstm_out)
    return actions, v


def reference_forward(x, h0, c0, w_ih, w_hh, b_ih, b_hh, w_a, b_a, w_v, b_v):
    """Pure-JAX reference matching torch.nn.LSTM + Linear + softmax(dim=1)."""
    H = h0.shape[1]

    def step(carry, x_t):
        h, c = carry
        gates = x_t @ w_ih.T + b_ih + h[0] @ w_hh.T + b_hh
        i_g = jax.nn.sigmoid(gates[0 * H:1 * H])
        f_g = jax.nn.sigmoid(gates[1 * H:2 * H])
        g_g = jnp.tanh(gates[2 * H:3 * H])
        o_g = jax.nn.sigmoid(gates[3 * H:4 * H])
        c_new = f_g * c[0] + i_g * g_g
        h_new = o_g * jnp.tanh(c_new)
        return (h_new[None], c_new[None]), h_new

    _, lstm_out = lax.scan(step, (h0, c0), x)
    logits = lstm_out @ w_a.T + b_a
    actions = jax.nn.softmax(logits, axis=1)
    v = lstm_out @ w_v.T + b_v
    return actions, v


if __name__ == "__main__":
    # Shapes implied by the module: batch=1 (hardcoded), seq=8, input=16, hidden=32.
    input_size, hidden_size, seq_len = 16, 32, 8
    key = jax.random.PRNGKey(0)
    ks = jax.random.split(key, 12)

    scale = 1.0 / jnp.sqrt(hidden_size)
    x_batched = jax.random.normal(ks[0], (1, seq_len, input_size), jnp.float32)  # batch_first
    x = x_batched[0]  # batch squeezed (batch=1)

    # init_hidden: xavier_normal on (1, 1, H) -> deterministic normal stand-in.
    h0 = jax.random.normal(ks[1], (1, hidden_size), jnp.float32) * scale
    c0 = jax.random.normal(ks[2], (1, hidden_size), jnp.float32) * scale

    # LSTM params (PyTorch shapes), deterministic uniform init like torch.
    w_ih = jax.random.uniform(ks[3], (4 * hidden_size, input_size), jnp.float32, -scale, scale)
    w_hh = jax.random.uniform(ks[4], (4 * hidden_size, hidden_size), jnp.float32, -scale, scale)
    b_ih = jax.random.uniform(ks[5], (4 * hidden_size,), jnp.float32, -scale, scale)
    b_hh = jax.random.uniform(ks[6], (4 * hidden_size,), jnp.float32, -scale, scale)

    # Actor / critic linear heads.
    w_a = jax.random.uniform(ks[7], (2, hidden_size), jnp.float32, -scale, scale)
    b_a = jax.random.uniform(ks[8], (2,), jnp.float32, -scale, scale)
    w_v = jax.random.uniform(ks[9], (1, hidden_size), jnp.float32, -scale, scale)
    b_v = jax.random.uniform(ks[10], (1,), jnp.float32, -scale, scale)

    params = (h0, c0, w_ih, w_hh, b_ih, b_hh, w_a, b_a, w_v, b_v)

    # One-time weight packing (outside the per-call jitted path).
    packed = prepare_params(*params)
    packed = jax.block_until_ready(packed)

    actions, v = acnet_forward(x, *packed)
    jax.block_until_ready((actions, v))

    ref_actions, ref_v = reference_forward(x, *params)
    assert actions.shape == (seq_len, 2) and v.shape == (seq_len, 1)
    assert jnp.allclose(actions, ref_actions, atol=1e-4, rtol=1e-4)
    assert jnp.allclose(v, ref_v, atol=1e-4, rtol=1e-4)

    print("KERNEL_OK")
</pallas_src>

<mosaic_0001>
module attributes {stable_mosaic.version = 11 : i64} {
  func.func @acnet_kernel(%arg0: memref<8x16xf32, #tpu.memory_space<vmem>>, %arg1: memref<1x32xf32, #tpu.memory_space<vmem>>, %arg2: memref<1x32xf32, #tpu.memory_space<vmem>>, %arg3: memref<16x128xf32, #tpu.memory_space<vmem>>, %arg4: memref<32x128xf32, #tpu.memory_space<vmem>>, %arg5: memref<1x128xf32, #tpu.memory_space<vmem>>, %arg6: memref<32x128xf32, #tpu.memory_space<vmem>>, %arg7: memref<1x128xf32, #tpu.memory_space<vmem>>, %arg8: memref<8x128xf32, #tpu.memory_space<vmem>>) attributes {dimension_semantics = [], scalar_prefetch = 0 : i64, scratch_operands = 0 : i64, tpu.core_type = #tpu.core_type<tc>} {
    %c0 = arith.constant 0 : index
    %c0_0 = arith.constant 0 : index
    %0 = vector.load %arg0[%c0, %c0_0] : memref<8x16xf32, #tpu.memory_space<vmem>>, vector<8x16xf32>
    %c0_1 = arith.constant 0 : index
    %c0_2 = arith.constant 0 : index
    %1 = vector.load %arg3[%c0_1, %c0_2] : memref<16x128xf32, #tpu.memory_space<vmem>>, vector<16x128xf32>
    %cst = arith.constant dense<0.000000e+00> : vector<8x128xf32>
    %2 = tpu.matmul %0, %1, %cst {dimension_numbers = #tpu.dot_dimension_numbers<[1], [0], [0], [1], [0, 0, 1, 1], [], []>} : vector<8x16xf32>, vector<16x128xf32>, vector<8x128xf32> -> vector<8x128xf32>
    %c0_3 = arith.constant 0 : index
    %c0_4 = arith.constant 0 : index
    %3 = vector.load %arg5[%c0_3, %c0_4] : memref<1x128xf32, #tpu.memory_space<vmem>>, vector<1x128xf32>
    %4 = vector.broadcast %3 : vector<1x128xf32> to vector<8x128xf32>
    %5 = arith.addf %2, %4 : vector<8x128xf32>
    %6 = vector.extract_strided_slice %5 {offsets = [0, 0], sizes = [1, 128], strides = [1, 1]} : vector<8x128xf32> to vector<1x128xf32>
    %7 = vector.extract_strided_slice %5 {offsets = [1, 0], sizes = [1, 128], strides = [1, 1]} : vector<8x128xf32> to vector<1x128xf32>
    %8 = vector.extract_strided_slice %5 {offsets = [2, 0], sizes = [1, 128], strides = [1, 1]} : vector<8x128xf32> to vector<1x128xf32>
    %9 = vector.extract_strided_slice %5 {offsets = [3, 0], sizes = [1, 128], strides = [1, 1]} : vector<8x128xf32> to vector<1x128xf32>
    %10 = vector.extract_strided_slice %5 {offsets = [4, 0], sizes = [1, 128], strides = [1, 1]} : vector<8x128xf32> to vector<1x128xf32>
    %11 = vector.extract_strided_slice %5 {offsets = [5, 0], sizes = [1, 128], strides = [1, 1]} : vector<8x128xf32> to vector<1x128xf32>
    %12 = vector.extract_strided_slice %5 {offsets = [6, 0], sizes = [1, 128], strides = [1, 1]} : vector<8x128xf32> to vector<1x128xf32>
    %13 = vector.extract_strided_slice %5 {offsets = [7, 0], sizes = [1, 128], strides = [1, 1]} : vector<8x128xf32> to vector<1x128xf32>
    %c0_5 = arith.constant 0 : index
    %c0_6 = arith.constant 0 : index
    %14 = vector.load %arg4[%c0_5, %c0_6] : memref<32x128xf32, #tpu.memory_space<vmem>>, vector<32x128xf32>
    %c0_7 = arith.constant 0 : index
    %c0_8 = arith.constant 0 : index
    %15 = vector.load %arg1[%c0_7, %c0_8] : memref<1x32xf32, #tpu.memory_space<vmem>>, vector<1x32xf32>
    %c0_9 = arith.constant 0 : index
    %c0_10 = arith.constant 0 : index
    %16 = vector.load %arg2[%c0_9, %c0_10] : memref<1x32xf32, #tpu.memory_space<vmem>>, vector<1x32xf32>
    %cst_11 = arith.constant 0.000000e+00 : f32
    %17 = vector.broadcast %cst_11 : f32 to vector<8x32xf32>
    %18 = tpu.iota {dimensions = array<i32: 0>} : vector<8x32xi32>
    %cst_12 = arith.constant dense<0.000000e+00> : vector<1x128xf32>
    %19 = tpu.matmul %15, %14, %cst_12 {dimension_numbers = #tpu.dot_dimension_numbers<[1], [0], [0], [1], [0, 0, 1, 1], [], []>} : vector<1x32xf32>, vector<32x128xf32>, vector<1x128xf32> -> vector<1x128xf32>
    %20 = arith.addf %6, %19 : vector<1x128xf32>
    %21 = vector.extract_strided_slice %20 {offsets = [0, 0], sizes = [1, 96], strides = [1, 1]} : vector<1x128xf32> to vector<1x96xf32>
    %22 = arith.negf %21 : vector<1x96xf32>
    %23 = math.exp %22 : vector<1x96xf32>
    %cst_13 = arith.constant 1.000000e+00 : f32
    %24 = vector.broadcast %cst_13 : f32 to vector<1x96xf32>
    %25 = arith.addf %24, %23 : vector<1x96xf32>
    %26 = arith.divf %24, %25 : vector<1x96xf32>
    %27 = vector.extract_strided_slice %26 {offsets = [0, 0], sizes = [1, 32], strides = [1, 1]} : vector<1x96xf32> to vector<1x32xf32>
    %28 = vector.extract_strided_slice %26 {offsets = [0, 32], sizes = [1, 32], strides = [1, 1]} : vector<1x96xf32> to vector<1x32xf32>
    %29 = vector.extract_strided_slice %26 {offsets = [0, 64], sizes = [1, 32], strides = [1, 1]} : vector<1x96xf32> to vector<1x32xf32>
    %30 = vector.extract_strided_slice %20 {offsets = [0, 96], sizes = [1, 32], strides = [1, 1]} : vector<1x128xf32> to vector<1x32xf32>
    %31 = math.tanh %30 : vector<1x32xf32>
    %32 = arith.mulf %28, %16 : vector<1x32xf32>
    %33 = arith.mulf %27, %31 : vector<1x32xf32>
    %34 = arith.addf %32, %33 : vector<1x32xf32>
    %35 = math.tanh %34 : vector<1x32xf32>
    %36 = arith.mulf %29, %35 : vector<1x32xf32>
    %c0_i32 = arith.constant 0 : i32
    %37 = vector.broadcast %c0_i32 : i32 to vector<8x32xi32>
    %38 = arith.cmpi eq, %18, %37 : vector<8x32xi32>
    %39 = vector.shape_cast %36 : vector<1x32xf32> to vector<1x32xf32>
    %40 = vector.broadcast %39 : vector<1x32xf32> to vector<8x32xf32>
    %41 = arith.select %38, %40, %17 : vector<8x32xi1>, vector<8x32xf32>
    %cst_14 = arith.constant dense<0.000000e+00> : vector<1x128xf32>
    %42 = tpu.matmul %36, %14, %cst_14 {dimension_numbers = #tpu.dot_dimension_numbers<[1], [0], [0], [1], [0, 0, 1, 1], [], []>} : vector<1x32xf32>, vector<32x128xf32>, vector<1x128xf32> -> vector<1x128xf32>
    %43 = arith.addf %7, %42 : vector<1x128xf32>
    %44 = vector.extract_strided_slice %43 {offsets = [0, 0], sizes = [1, 96], strides = [1, 1]} : vector<1x128xf32> to vector<1x96xf32>
    %45 = arith.negf %44 : vector<1x96xf32>
    %46 = math.exp %45 : vector<1x96xf32>
    %cst_15 = arith.constant 1.000000e+00 : f32
    %47 = vector.broadcast %cst_15 : f32 to vector<1x96xf32>
    %48 = arith.addf %47, %46 : vector<1x96xf32>
    %49 = arith.divf %47, %48 : vector<1x96xf32>
    %50 = vector.extract_strided_slice %49 {offsets = [0, 0], sizes = [1, 32], strides = [1, 1]} : vector<1x96xf32> to vector<1x32xf32>
    %51 = vector.extract_strided_slice %49 {offsets = [0, 32], sizes = [1, 32], strides = [1, 1]} : vector<1x96xf32> to vector<1x32xf32>
    %52 = vector.extract_strided_slice %49 {offsets = [0, 64], sizes = [1, 32], strides = [1, 1]} : vector<1x96xf32> to vector<1x32xf32>
    %53 = vector.extract_strided_slice %43 {offsets = [0, 96], sizes = [1, 32], strides = [1, 1]} : vector<1x128xf32> to vector<1x32xf32>
    %54 = math.tanh %53 : vector<1x32xf32>
    %55 = arith.mulf %51, %34 : vector<1x32xf32>
    %56 = arith.mulf %50, %54 : vector<1x32xf32>
    %57 = arith.addf %55, %56 : vector<1x32xf32>
    %58 = math.tanh %57 : vector<1x32xf32>
    %59 = arith.mulf %52, %58 : vector<1x32xf32>
    %c1_i32 = arith.constant 1 : i32
    %60 = vector.broadcast %c1_i32 : i32 to vector<8x32xi32>
    %61 = arith.cmpi eq, %18, %60 : vector<8x32xi32>
    %62 = vector.shape_cast %59 : vector<1x32xf32> to vector<1x32xf32>
    %63 = vector.broadcast %62 : vector<1x32xf32> to vector<8x32xf32>
    %64 = arith.select %61, %63, %41 : vector<8x32xi1>, vector<8x32xf32>
    %cst_16 = arith.constant dense<0.000000e+00> : vector<1x128xf32>
    %65 = tpu.matmul %59, %14, %cst_16 {dimension_numbers = #tpu.dot_dimension_numbers<[1], [0], [0], [1], [0, 0, 1, 1], [], []>} : vector<1x32xf32>, vector<32x128xf32>, vector<1x128xf32> -> vector<1x128xf32>
    %66 = arith.addf %8, %65 : vector<1x128xf32>
    %67 = vector.extract_strided_slice %66 {offsets = [0, 0], sizes = [1, 96], strides = [1, 1]} : vector<1x128xf32> to vector<1x96xf32>
    %68 = arith.negf %67 : vector<1x96xf32>
    %69 = math.exp %68 : vector<1x96xf32>
    %cst_17 = arith.constant 1.000000e+00 : f32
    %70 = vector.broadcast %cst_17 : f32 to vector<1x96xf32>
    %71 = arith.addf %70, %69 : vector<1x96xf32>
    %72 = arith.divf %70, %71 : vector<1x96xf32>
    %73 = vector.extract_strided_slice %72 {offsets = [0, 0], sizes = [1, 32], strides = [1, 1]} : vector<1x96xf32> to vector<1x32xf32>
    %74 = vector.extract_strided_slice %72 {offsets = [0, 32], sizes = [1, 32], strides = [1, 1]} : vector<1x96xf32> to vector<1x32xf32>
    %75 = vector.extract_strided_slice %72 {offsets = [0, 64], sizes = [1, 32], strides = [1, 1]} : vector<1x96xf32> to vector<1x32xf32>
    %76 = vector.extract_strided_slice %66 {offsets = [0, 96], sizes = [1, 32], strides = [1, 1]} : vector<1x128xf32> to vector<1x32xf32>
    %77 = math.tanh %76 : vector<1x32xf32>
    %78 = arith.mulf %74, %57 : vector<1x32xf32>
    %79 = arith.mulf %73, %77 : vector<1x32xf32>
    %80 = arith.addf %78, %79 : vector<1x32xf32>
    %81 = math.tanh %80 : vector<1x32xf32>
    %82 = arith.mulf %75, %81 : vector<1x32xf32>
    %c2_i32 = arith.constant 2 : i32
    %83 = vector.broadcast %c2_i32 : i32 to vector<8x32xi32>
    %84 = arith.cmpi eq, %18, %83 : vector<8x32xi32>
    %85 = vector.shape_cast %82 : vector<1x32xf32> to vector<1x32xf32>
    %86 = vector.broadcast %85 : vector<1x32xf32> to vector<8x32xf32>
    %87 = arith.select %84, %86, %64 : vector<8x32xi1>, vector<8x32xf32>
    %cst_18 = arith.constant dense<0.000000e+00> : vector<1x128xf32>
    %88 = tpu.matmul %82, %14, %cst_18 {dimension_numbers = #tpu.dot_dimension_numbers<[1], [0], [0], [1], [0, 0, 1, 1], [], []>} : vector<1x32xf32>, vector<32x128xf32>, vector<1x128xf32> -> vector<1x128xf32>
    %89 = arith.addf %9, %88 : vector<1x128xf32>
    %90 = vector.extract_strided_slice %89 {offsets = [0, 0], sizes = [1, 96], strides = [1, 1]} : vector<1x128xf32> to vector<1x96xf32>
    %91 = arith.negf %90 : vector<1x96xf32>
    %92 = math.exp %91 : vector<1x96xf32>
    %cst_19 = arith.constant 1.000000e+00 : f32
    %93 = vector.broadcast %cst_19 : f32 to vector<1x96xf32>
    %94 = arith.addf %93, %92 : vector<1x96xf32>
    %95 = arith.divf %93, %94 : vector<1x96xf32>
    %96 = vector.extract_strided_slice %95 {offsets = [0, 0], sizes = [1, 32], strides = [1, 1]} : vector<1x96xf32> to vector<1x32xf32>
    %97 = vector.extract_strided_slice %95 {offsets = [0, 32], sizes = [1, 32], strides = [1, 1]} : vector<1x96xf32> to vector<1x32xf32>
    %98 = vector.extract_strided_slice %95 {offsets = [0, 64], sizes = [1, 32], strides = [1, 1]} : vector<1x96xf32> to vector<1x32xf32>
    %99 = vector.extract_strided_slice %89 {offsets = [0, 96], sizes = [1, 32], strides = [1, 1]} : vector<1x128xf32> to vector<1x32xf32>
    %100 = math.tanh %99 : vector<1x32xf32>
    %101 = arith.mulf %97, %80 : vector<1x32xf32>
    %102 = arith.mulf %96, %100 : vector<1x32xf32>
    %103 = arith.addf %101, %102 : vector<1x32xf32>
    %104 = math.tanh %103 : vector<1x32xf32>
    %105 = arith.mulf %98, %104 : vector<1x32xf32>
    %c3_i32 = arith.constant 3 : i32
    %106 = vector.broadcast %c3_i32 : i32 to vector<8x32xi32>
    %107 = arith.cmpi eq, %18, %106 : vector<8x32xi32>
    %108 = vector.shape_cast %105 : vector<1x32xf32> to vector<1x32xf32>
    %109 = vector.broadcast %108 : vector<1x32xf32> to vector<8x32xf32>
    %110 = arith.select %107, %109, %87 : vector<8x32xi1>, vector<8x32xf32>
    %cst_20 = arith.constant dense<0.000000e+00> : vector<1x128xf32>
    %111 = tpu.matmul %105, %14, %cst_20 {dimension_numbers = #tpu.dot_dimension_numbers<[1], [0], [0], [1], [0, 0, 1, 1], [], []>} : vector<1x32xf32>, vector<32x128xf32>, vector<1x128xf32> -> vector<1x128xf32>
    %112 = arith.addf %10, %111 : vector<1x128xf32>
    %113 = vector.extract_strided_slice %112 {offsets = [0, 0], sizes = [1, 96], strides = [1, 1]} : vector<1x128xf32> to vector<1x96xf32>
    %114 = arith.negf %113 : vector<1x96xf32>
    %115 = math.exp %114 : vector<1x96xf32>
    %cst_21 = arith.constant 1.000000e+00 : f32
    %116 = vector.broadcast %cst_21 : f32 to vector<1x96xf32>
    %117 = arith.addf %116, %115 : vector<1x96xf32>
    %118 = arith.divf %116, %117 : vector<1x96xf32>
    %119 = vector.extract_strided_slice %118 {offsets = [0, 0], sizes = [1, 32], strides = [1, 1]} : vector<1x96xf32> to vector<1x32xf32>
    %120 = vector.extract_strided_slice %118 {offsets = [0, 32], sizes = [1, 32], strides = [1, 1]} : vector<1x96xf32> to vector<1x32xf32>
    %121 = vector.extract_strided_slice %118 {offsets = [0, 64], sizes = [1, 32], strides = [1, 1]} : vector<1x96xf32> to vector<1x32xf32>
    %122 = vector.extract_strided_slice %112 {offsets = [0, 96], sizes = [1, 32], strides = [1, 1]} : vector<1x128xf32> to vector<1x32xf32>
    %123 = math.tanh %122 : vector<1x32xf32>
    %124 = arith.mulf %120, %103 : vector<1x32xf32>
    %125 = arith.mulf %119, %123 : vector<1x32xf32>
    %126 = arith.addf %124, %125 : vector<1x32xf32>
    %127 = math.tanh %126 : vector<1x32xf32>
    %128 = arith.mulf %121, %127 : vector<1x32xf32>
    %c4_i32 = arith.constant 4 : i32
    %129 = vector.broadcast %c4_i32 : i32 to vector<8x32xi32>
    %130 = arith.cmpi eq, %18, %129 : vector<8x32xi32>
    %131 = vector.shape_cast %128 : vector<1x32xf32> to vector<1x32xf32>
    %132 = vector.broadcast %131 : vector<1x32xf32> to vector<8x32xf32>
    %133 = arith.select %130, %132, %110 : vector<8x32xi1>, vector<8x32xf32>
    %cst_22 = arith.constant dense<0.000000e+00> : vector<1x128xf32>
    %134 = tpu.matmul %128, %14, %cst_22 {dimension_numbers = #tpu.dot_dimension_numbers<[1], [0], [0], [1], [0, 0, 1, 1], [], []>} : vector<1x32xf32>, vector<32x128xf32>, vector<1x128xf32> -> vector<1x128xf32>
    %135 = arith.addf %11, %134 : vector<1x128xf32>
    %136 = vector.extract_strided_slice %135 {offsets = [0, 0], sizes = [1, 96], strides = [1, 1]} : vector<1x128xf32> to vector<1x96xf32>
    %137 = arith.negf %136 : vector<1x96xf32>
    %138 = math.exp %137 : vector<1x96xf32>
    %cst_23 = arith.constant 1.000000e+00 : f32
    %139 = vector.broadcast %cst_23 : f32 to vector<1x96xf32>
    %140 = arith.addf %139, %138 : vector<1x96xf32>
    %141 = arith.divf %139, %140 : vector<1x96xf32>
    %142 = vector.extract_strided_slice %141 {offsets = [0, 0], sizes = [1, 32], strides = [1, 1]} : vector<1x96xf32> to vector<1x32xf32>
    %143 = vector.extract_strided_slice %141 {offsets = [0, 32], sizes = [1, 32], strides = [1, 1]} : vector<1x96xf32> to vector<1x32xf32>
    %144 = vector.extract_strided_slice %141 {offsets = [0, 64], sizes = [1, 32], strides = [1, 1]} : vector<1x96xf32> to vector<1x32xf32>
    %145 = vector.extract_strided_slice %135 {offsets = [0, 96], sizes = [1, 32], strides = [1, 1]} : vector<1x128xf32> to vector<1x32xf32>
    %146 = math.tanh %145 : vector<1x32xf32>
    %147 = arith.mulf %143, %126 : vector<1x32xf32>
    %148 = arith.mulf %142, %146 : vector<1x32xf32>
    %149 = arith.addf %147, %148 : vector<1x32xf32>
    %150 = math.tanh %149 : vector<1x32xf32>
    %151 = arith.mulf %144, %150 : vector<1x32xf32>
    %c5_i32 = arith.constant 5 : i32
    %152 = vector.broadcast %c5_i32 : i32 to vector<8x32xi32>
    %153 = arith.cmpi eq, %18, %152 : vector<8x32xi32>
    %154 = vector.shape_cast %151 : vector<1x32xf32> to vector<1x32xf32>
    %155 = vector.broadcast %154 : vector<1x32xf32> to vector<8x32xf32>
    %156 = arith.select %153, %155, %133 : vector<8x32xi1>, vector<8x32xf32>
    %cst_24 = arith.constant dense<0.000000e+00> : vector<1x128xf32>
    %157 = tpu.matmul %151, %14, %cst_24 {dimension_numbers = #tpu.dot_dimension_numbers<[1], [0], [0], [1], [0, 0, 1, 1], [], []>} : vector<1x32xf32>, vector<32x128xf32>, vector<1x128xf32> -> vector<1x128xf32>
    %158 = arith.addf %12, %157 : vector<1x128xf32>
    %159 = vector.extract_strided_slice %158 {offsets = [0, 0], sizes = [1, 96], strides = [1, 1]} : vector<1x128xf32> to vector<1x96xf32>
    %160 = arith.negf %159 : vector<1x96xf32>
    %161 = math.exp %160 : vector<1x96xf32>
    %cst_25 = arith.constant 1.000000e+00 : f32
    %162 = vector.broadcast %cst_25 : f32 to vector<1x96xf32>
    %163 = arith.addf %162, %161 : vector<1x96xf32>
    %164 = arith.divf %162, %163 : vector<1x96xf32>
    %165 = vector.extract_strided_slice %164 {offsets = [0, 0], sizes = [1, 32], strides = [1, 1]} : vector<1x96xf32> to vector<1x32xf32>
    %166 = vector.extract_strided_slice %164 {offsets = [0, 32], sizes = [1, 32], strides = [1, 1]} : vector<1x96xf32> to vector<1x32xf32>
    %167 = vector.extract_strided_slice %164 {offsets = [0, 64], sizes = [1, 32], strides = [1, 1]} : vector<1x96xf32> to vector<1x32xf32>
    %168 = vector.extract_strided_slice %158 {offsets = [0, 96], sizes = [1, 32], strides = [1, 1]} : vector<1x128xf32> to vector<1x32xf32>
    %169 = math.tanh %168 : vector<1x32xf32>
    %170 = arith.mulf %166, %149 : vector<1x32xf32>
    %171 = arith.mulf %165, %169 : vector<1x32xf32>
    %172 = arith.addf %170, %171 : vector<1x32xf32>
    %173 = math.tanh %172 : vector<1x32xf32>
    %174 = arith.mulf %167, %173 : vector<1x32xf32>
    %c6_i32 = arith.constant 6 : i32
    %175 = vector.broadcast %c6_i32 : i32 to vector<8x32xi32>
    %176 = arith.cmpi eq, %18, %175 : vector<8x32xi32>
    %177 = vector.shape_cast %174 : vector<1x32xf32> to vector<1x32xf32>
    %178 = vector.broadcast %177 : vector<1x32xf32> to vector<8x32xf32>
    %179 = arith.select %176, %178, %156 : vector<8x32xi1>, vector<8x32xf32>
    %cst_26 = arith.constant dense<0.000000e+00> : vector<1x128xf32>
    %180 = tpu.matmul %174, %14, %cst_26 {dimension_numbers = #tpu.dot_dimension_numbers<[1], [0], [0], [1], [0, 0, 1, 1], [], []>} : vector<1x32xf32>, vector<32x128xf32>, vector<1x128xf32> -> vector<1x128xf32>
    %181 = arith.addf %13, %180 : vector<1x128xf32>
    %182 = vector.extract_strided_slice %181 {offsets = [0, 0], sizes = [1, 96], strides = [1, 1]} : vector<1x128xf32> to vector<1x96xf32>
    %183 = arith.negf %182 : vector<1x96xf32>
    %184 = math.exp %183 : vector<1x96xf32>
    %cst_27 = arith.constant 1.000000e+00 : f32
    %185 = vector.broadcast %cst_27 : f32 to vector<1x96xf32>
    %186 = arith.addf %185, %184 : vector<1x96xf32>
    %187 = arith.divf %185, %186 : vector<1x96xf32>
    %188 = vector.extract_strided_slice %187 {offsets = [0, 0], sizes = [1, 32], strides = [1, 1]} : vector<1x96xf32> to vector<1x32xf32>
    %189 = vector.extract_strided_slice %187 {offsets = [0, 32], sizes = [1, 32], strides = [1, 1]} : vector<1x96xf32> to vector<1x32xf32>
    %190 = vector.extract_strided_slice %187 {offsets = [0, 64], sizes = [1, 32], strides = [1, 1]} : vector<1x96xf32> to vector<1x32xf32>
    %191 = vector.extract_strided_slice %181 {offsets = [0, 96], sizes = [1, 32], strides = [1, 1]} : vector<1x128xf32> to vector<1x32xf32>
    %192 = math.tanh %191 : vector<1x32xf32>
    %193 = arith.mulf %189, %172 : vector<1x32xf32>
    %194 = arith.mulf %188, %192 : vector<1x32xf32>
    %195 = arith.addf %193, %194 : vector<1x32xf32>
    %196 = math.tanh %195 : vector<1x32xf32>
    %197 = arith.mulf %190, %196 : vector<1x32xf32>
    %c7_i32 = arith.constant 7 : i32
    %198 = vector.broadcast %c7_i32 : i32 to vector<8x32xi32>
    %199 = arith.cmpi eq, %18, %198 : vector<8x32xi32>
    %200 = vector.shape_cast %197 : vector<1x32xf32> to vector<1x32xf32>
    %201 = vector.broadcast %200 : vector<1x32xf32> to vector<8x32xf32>
    %202 = arith.select %199, %201, %179 : vector<8x32xi1>, vector<8x32xf32>
    %c0_28 = arith.constant 0 : index
    %c0_29 = arith.constant 0 : index
    %203 = vector.load %arg6[%c0_28, %c0_29] : memref<32x128xf32, #tpu.memory_space<vmem>>, vector<32x128xf32>
    %cst_30 = arith.constant dense<0.000000e+00> : vector<8x128xf32>
    %204 = tpu.matmul %202, %203, %cst_30 {dimension_numbers = #tpu.dot_dimension_numbers<[1], [0], [0], [1], [0, 0, 1, 1], [], []>} : vector<8x32xf32>, vector<32x128xf32>, vector<8x128xf32> -> vector<8x128xf32>
    %c0_31 = arith.constant 0 : index
    %c0_32 = arith.constant 0 : index
    %205 = vector.load %arg7[%c0_31, %c0_32] : memref<1x128xf32, #tpu.memory_space<vmem>>, vector<1x128xf32>
    %206 = vector.broadcast %205 : vector<1x128xf32> to vector<8x128xf32>
    %207 = arith.addf %204, %206 : vector<8x128xf32>
    %208 = tpu.iota {dimensions = array<i32: 1>} : vector<8x128xi32>
    %c2_i32_33 = arith.constant 2 : i32
    %209 = vector.broadcast %c2_i32_33 : i32 to vector<8x128xi32>
    %210 = arith.cmpi slt, %208, %209 : vector<8x128xi32>
    %211 = arith.negf %207 : vector<8x128xf32>
    %212 = math.exp %211 : vector<8x128xf32>
    %cst_34 = arith.constant 1.000000e+00 : f32
    %213 = vector.broadcast %cst_34 : f32 to vector<8x128xf32>
    %214 = arith.addf %213, %212 : vector<8x128xf32>
    %215 = arith.divf %213, %214 : vector<8x128xf32>
    %216 = arith.select %210, %215, %207 : vector<8x128xi1>, vector<8x128xf32>
    %c0_35 = arith.constant 0 : index
    %c0_36 = arith.constant 0 : index
    %217 = vector.load %arg8[%c0_35, %c0_36] : memref<8x128xf32, #tpu.memory_space<vmem>>, vector<8x128xf32>
    tpu.vector_store %arg8[%c0_35, %c0_36], %216 {strides = array<i32>} : memref<8x128xf32, #tpu.memory_space<vmem>>, vector<8x128xf32>,
    return
  }
}

</mosaic_0001>

<llo_original>
// kernel: acnet_forward.1
$region0: #{acnet_forward.1}
  #allocation0 [shape = 'u32[]', space=smem, size = 0x4, offset = 0x4, fixed_abs, tag = 'smem constant byte address 0x4 - core index']
  #allocation1 [shape = 'u32[144,128]{1,0:T(1,128)}', space=vmem, size = 0x12000, scoped, tag = 'internal scratch']
  %s0 = inlined_call_operand.hbm [shape: f32[8,16], index: 0, kind: input, shape index: {}]
  %s1 = inlined_call_operand.vmem [shape: f32[1,32], index: 1, kind: input, shape index: {}]
  %s2 = inlined_call_operand.vmem [shape: f32[1,32], index: 2, kind: input, shape index: {}]
  %s3 = inlined_call_operand.hbm [shape: f32[16,128], index: 3, kind: input, shape index: {}]
  %s4 = inlined_call_operand.hbm [shape: f32[32,128], index: 4, kind: input, shape index: {}]
  %s5 = inlined_call_operand.vmem [shape: f32[1,128], index: 5, kind: input, shape index: {}]
  %s6 = inlined_call_operand.hbm [shape: f32[32,128], index: 6, kind: input, shape index: {}]
  %s7 = inlined_call_operand.vmem [shape: f32[1,128], index: 7, kind: input, shape index: {}]
  %s8 = inlined_call_operand.vmem [shape: f32[8,128], index: 8, kind: output, shape index: {}]
  %s9 = sld [smem:[#allocation0]]
  $region58: #{acnet_forward.1} parent=0
    _
  %s11 = ssub.s32 1, %s9
  %s12 = scalar_select 0, %s11, %s9
  $region1: #{acnet_forward.1} parent=0
    #allocation2 [shape = 'u8[4096]{0}', space=vmem, size = 0x1000, scoped, tag = 'input window, operand 0, single buffered']
    #allocation3 [shape = 's32[1]{0}', space=sflag, size = 0x4, scoped, tag = 'scoped memory for acnet_forward.1']
    #allocation4 [shape = 'u8[8192]{0}', space=vmem, size = 0x2000, scoped, tag = 'input window, operand 3, single buffered']
    #allocation5 [shape = 's32[1]{0}', space=sflag, size = 0x4, scoped, tag = 'scoped memory for acnet_forward.1']
    #allocation6 [shape = 'u8[16384]{0}', space=vmem, size = 0x4000, scoped, tag = 'input window, operand 4, single buffered']
    #allocation7 [shape = 'u8[16384]{0}', space=vmem, size = 0x4000, scoped, tag = 'input window, operand 6, single buffered']
    #allocation8 [shape = 's32[1]{0}', space=sflag, size = 0x4, scoped, tag = 'scoped memory for acnet_forward.1']
    %13 = vsyncpa [#allocation3], 0
    %14 = vsyncpa [#allocation5], 0
    %15 = vsyncpa [#allocation8], 0
    // Predicated region
    $region2: #{acnet_forward.1} parent=1 // pred_check
      _
    $region3: #{acnet_forward.1} parent=1 // pred_check_branch
      %17 = sbr.rel (0) target = $region5
    $region4: #{acnet_forward.1} parent=1 // pred_region
      %s19 = ssub.s32 128, 128
      %20 = vsyncadd [#allocation3], %s19
      %s22 = sshll.u32 [#allocation2], 4
      %s23 = int_to_ptr.vmem [resolvable:$true] %s22
      %25 = dma.hbm_to_vmem [thread:$0]  %s0, 128, %s23, [#allocation3]
    $region5: #{acnet_forward.1} parent=1 // pred_fallthru
      _
    // Predicated region
    $region6: #{acnet_forward.1} parent=1 // pred_check
      _
    $region7: #{acnet_forward.1} parent=1 // pred_check_branch
      %27 = sbr.rel (0) target = $region9
    $region8: #{acnet_forward.1} parent=1 // pred_region
      _
    $region9: #{acnet_forward.1} parent=1 // pred_fallthru
      _
    // Predicated region
    $region10: #{acnet_forward.1} parent=1 // pred_check
      _
    $region11: #{acnet_forward.1} parent=1 // pred_check_branch
      %29 = sbr.rel (0) target = $region13
    $region12: #{acnet_forward.1} parent=1 // pred_region
      _
    $region13: #{acnet_forward.1} parent=1 // pred_fallthru
      _
    // Predicated region
    $region14: #{acnet_forward.1} parent=1 // pred_check
      _
    $region15: #{acnet_forward.1} parent=1 // pred_check_branch
      %31 = sbr.rel (0) target = $region17
    $region16: #{acnet_forward.1} parent=1 // pred_region
      %s33 = ssub.s32 256, 256
      %34 = vsyncadd [#allocation5], %s33
      %s35 = sshll.u32 [#allocation4], 4
      %s36 = int_to_ptr.vmem [resolvable:$true] %s35
      %41 = dma.hbm_to_vmem [thread:$0]  %s3, 256, %s36, [#allocation5], 128, 128, 8
    $region17: #{acnet_forward.1} parent=1 // pred_fallthru
      _
    // Predicated region
    $region18: #{acnet_forward.1} parent=1 // pred_check
      _
    $region19: #{acnet_forward.1} parent=1 // pred_check_branch
      %43 = sbr.rel (0) target = $region21
    $region20: #{acnet_forward.1} parent=1 // pred_region
      %s45 = ssub.s32 512, 512
      %46 = vsyncadd [#allocation5], %s45
      %s47 = sshll.u32 [#allocation6], 4
      %s48 = int_to_ptr.vmem [resolvable:$true] %s47
      %53 = dma.hbm_to_vmem [thread:$0]  %s4, 512, %s48, [#allocation5], 128, 128, 8
    $region21: #{acnet_forward.1} parent=1 // pred_fallthru
      _
    // Predicated region
    $region22: #{acnet_forward.1} parent=1 // pred_check
      _
    $region23: #{acnet_forward.1} parent=1 // pred_check_branch
      %55 = sbr.rel (0) target = $region25
    $region24: #{acnet_forward.1} parent=1 // pred_region
      _
    $region25: #{acnet_forward.1} parent=1 // pred_fallthru
      _
    // Predicated region
    $region26: #{acnet_forward.1} parent=1 // pred_check
      _
    $region27: #{acnet_forward.1} parent=1 // pred_check_branch
      %57 = sbr.rel (0) target = $region29
    $region28: #{acnet_forward.1} parent=1 // pred_region
      %s59 = ssub.s32 512, 512
      %60 = vsyncadd [#allocation8], %s59
      %s61 = sshll.u32 [#allocation7], 4
      %s62 = int_to_ptr.vmem [resolvable:$true] %s61
      %67 = dma.hbm_to_vmem [thread:$0]  %s6, 512, %s62, [#allocation8], 128, 128, 8
    $region29: #{acnet_forward.1} parent=1 // pred_fallthru
      _
    // Predicated region
    $region30: #{acnet_forward.1} parent=1 // pred_check
      _
    $region31: #{acnet_forward.1} parent=1 // pred_check_branch
      %69 = sbr.rel (0) target = $region33
    $region32: #{acnet_forward.1} parent=1 // pred_region
      _
    $region33: #{acnet_forward.1} parent=1 // pred_fallthru
      _
    // Predicated region
    $region34: #{acnet_forward.1} parent=1 // pred_check
      _
    $region35: #{acnet_forward.1} parent=1 // pred_check_branch
      %71 = sbr.rel (0) target = $region37
    $region36: #{acnet_forward.1} parent=1 // pred_region
      %72 = dma.done [#allocation3], 128
    $region37: #{acnet_forward.1} parent=1 // pred_fallthru
      _
    // Predicated region
    $region38: #{acnet_forward.1} parent=1 // pred_check
      _
    $region39: #{acnet_forward.1} parent=1 // pred_check_branch
      %74 = sbr.rel (0) target = $region41
    $region40: #{acnet_forward.1} parent=1 // pred_region
      %75 = dma.done [#allocation5], 256
    $region41: #{acnet_forward.1} parent=1 // pred_fallthru
      _
    // Predicated region
    $region42: #{acnet_forward.1} parent=1 // pred_check
      _
    $region43: #{acnet_forward.1} parent=1 // pred_check_branch
      %77 = sbr.rel (0) target = $region45
    $region44: #{acnet_forward.1} parent=1 // pred_region
      %78 = dma.done [#allocation5], 512
    $region45: #{acnet_forward.1} parent=1 // pred_fallthru
      _
    // Predicated region
    $region46: #{acnet_forward.1} parent=1 // pred_check
      _
    $region47: #{acnet_forward.1} parent=1 // pred_check_branch
      %80 = sbr.rel (0) target = $region49
    $region48: #{acnet_forward.1} parent=1 // pred_region
      %81 = dma.done [#allocation8], 512
    $region49: #{acnet_forward.1} parent=1 // pred_fallthru
      _
    %v82 = vld [vmem:[#allocation2] sm:$0xff]
    %v83 = vld [vmem:[#allocation4] sm:$0xff]
    %v84 = vld [vmem:[#allocation4 + $0x8] sm:$0xff]
    %v85 = vld [vmem:[%s5] sm:$0x1]
    %v87 = vlaneseq
    %v88 = vshrl.u32 %v87, 7
    %v89 = vsub.s32 0, %v88
    %v90 = vrot.slane %v85, %v89
    %vm92 = vcmask 130048
    %v94 = vsel %vm92, %v82, 0
    %96 = vmatprep.subr.mxu0 0.0
    %97 = vmatpush1.msra.mxu0 %v83
    %98 = vmatprep.subr.mxu0 0.0
    %99 = vmatpush1.msra.mxu0 %v84
    %100 = vmatprep.subr.mxu0 0.0
    %101 = vmatpush1.msra.mxu0 0.0
    %102 = vmatprep.subr.mxu0 0.0
    %103 = vmatpush1.msra.mxu0 0.0
    %104 = vmatprep.subr.mxu0 0.0
    %105 = vmatpush1.msra.mxu0 0.0
    %106 = vmatprep.subr.mxu0 0.0
    %107 = vmatpush1.msra.mxu0 0.0
    %108 = vmatprep.subr.mxu0 0.0
    %109 = vmatpush1.msra.mxu0 0.0
    %110 = vmatprep.subr.mxu0 0.0
    %111 = vmatpush1.msra.mxu0 0.0
    %112 = vmatprep.subr.mxu0 0.0
    %113 = vmatpush1.msra.mxu0 0.0
    %114 = vmatprep.subr.mxu0 0.0
    %115 = vmatpush1.msra.mxu0 0.0
    %116 = vmatprep.subr.mxu0 0.0
    %117 = vmatpush1.msra.mxu0 0.0
    %118 = vmatprep.subr.mxu0 0.0
    %119 = vmatpush1.msra.mxu0 0.0
    %120 = vmatprep.subr.mxu0 0.0
    %121 = vmatpush1.msra.mxu0 0.0
    %122 = vmatprep.subr.mxu0 0.0
    %123 = vmatpush1.msra.mxu0 0.0
    %124 = vmatprep.subr.mxu0 0.0
    %125 = vmatpush1.msra.mxu0 0.0
    %126 = vmatprep.subr.mxu0 0.0
    %127 = vmatpush1.msra.mxu0 0.0
    %128 = vmatprep.subr.mxu0 0.0
    %129 = vmatpush1.msra.mxu0 0.0
    %130 = vmatprep.subr.mxu0 0.0
    %131 = vmatpush1.msra.mxu0 0.0
    %132 = vmatprep.subr.mxu0 0.0
    %133 = vmatpush1.msra.mxu0 0.0
    %134 = vmatprep.subr.mxu0 0.0
    %135 = vmatpush1.msra.mxu0 0.0
    %136 = vmatprep.subr.mxu0 0.0
    %137 = vmatpush1.msra.mxu0 0.0
    %138 = vmatprep.subr.mxu0 0.0
    %139 = vmatpush1.msra.mxu0 0.0
    %140 = vmatprep.subr.mxu0 0.0
    %141 = vmatpush1.msra.mxu0 0.0
    %142 = vmatprep.subr.mxu0 0.0
    %143 = vmatpush1.msra.mxu0 0.0
    %144 = vmatprep.subr.mxu0 0.0
    %145 = vmatpush1.msra.mxu0 0.0
    %146 = vmatprep.subr.mxu0 0.0
    %147 = vmatpush1.msra.mxu0 0.0
    %148 = vmatprep.subr.mxu0 0.0
    %149 = vmatpush1.msra.mxu0 0.0
    %150 = vmatprep.subr.mxu0 0.0
    %151 = vmatpush1.msra.mxu0 0.0
    %152 = vmatprep.subr.mxu0 0.0
    %153 = vmatpush1.msra.mxu0 0.0
    %154 = vmatprep.subr.mxu0 0.0
    %155 = vmatpush1.msra.mxu0 0.0
    %156 = vmatprep.subr.mxu0 0.0
    %157 = vmatpush1.msra.mxu0 0.0
    %158 = vmatprep.subr.mxu0 0.0
    %159 = vmatpush1.msra.mxu0 0.0
    %160 = vmatprep.mubr.f32.mxu0 0.0
    %161 = vmatmul.mubr.f32.gmra.mrb[0].mxu0 %v94
    %v162 = vpop.f32.mrb[0].mxu0
    %v163 = vadd.f32 %v90, %v162
    %v164 = vpop.f32.mrb[0].mxu0
    %165 = vdwg.mxu0
    %v166 = vld [vmem:[#allocation6] sm:$0xff]
    %v167 = vld [vmem:[#allocation6 + $0x8] sm:$0xff]
    %v168 = vld [vmem:[#allocation6 + $0x10] sm:$0xff]
    %v169 = vld [vmem:[#allocation6 + $0x18] sm:$0xff]
    %v170 = vld [vmem:[%s1] sm:$0x1]
    %v171 = vld [vmem:[%s2] sm:$0x1]
    %v172 = vlaneseq
    %v173 = vshrl.u32 %v172, 7
    %vm174 = vcmask 261120
    %v176 = vsel %vm174, %v170, 0
    %178 = vmatprep.subr.mxu0 0.0
    %179 = vmatpush1.msra.mxu0 %v166
    %180 = vmatprep.subr.mxu0 0.0
    %181 = vmatpush1.msra.mxu0 %v167
    %182 = vmatprep.subr.mxu0 0.0
    %183 = vmatpush1.msra.mxu0 %v168
    %184 = vmatprep.subr.mxu0 0.0
    %185 = vmatpush1.msra.mxu0 %v169
    %186 = vmatprep.subr.mxu0 0.0
    %187 = vmatpush1.msra.mxu0 0.0
    %188 = vmatprep.subr.mxu0 0.0
    %189 = vmatpush1.msra.mxu0 0.0
    %190 = vmatprep.subr.mxu0 0.0
    %191 = vmatpush1.msra.mxu0 0.0
    %192 = vmatprep.subr.mxu0 0.0
    %193 = vmatpush1.msra.mxu0 0.0
    %194 = vmatprep.subr.mxu0 0.0
    %195 = vmatpush1.msra.mxu0 0.0
    %196 = vmatprep.subr.mxu0 0.0
    %197 = vmatpush1.msra.mxu0 0.0
    %198 = vmatprep.subr.mxu0 0.0
    %199 = vmatpush1.msra.mxu0 0.0
    %200 = vmatprep.subr.mxu0 0.0
    %201 = vmatpush1.msra.mxu0 0.0
    %202 = vmatprep.subr.mxu0 0.0
    %203 = vmatpush1.msra.mxu0 0.0
    %204 = vmatprep.subr.mxu0 0.0
    %205 = vmatpush1.msra.mxu0 0.0
    %206 = vmatprep.subr.mxu0 0.0
    %207 = vmatpush1.msra.mxu0 0.0
    %208 = vmatprep.subr.mxu0 0.0
    %209 = vmatpush1.msra.mxu0 0.0
    %210 = vmatprep.subr.mxu0 0.0
    %211 = vmatpush1.msra.mxu0 0.0
    %212 = vmatprep.subr.mxu0 0.0
    %213 = vmatpush1.msra.mxu0 0.0
    %214 = vmatprep.subr.mxu0 0.0
    %215 = vmatpush1.msra.mxu0 0.0
    %216 = vmatprep.subr.mxu0 0.0
    %217 = vmatpush1.msra.mxu0 0.0
    %218 = vmatprep.subr.mxu0 0.0
    %219 = vmatpush1.msra.mxu0 0.0
    %220 = vmatprep.subr.mxu0 0.0
    %221 = vmatpush1.msra.mxu0 0.0
    %222 = vmatprep.subr.mxu0 0.0
    %223 = vmatpush1.msra.mxu0 0.0
    %224 = vmatprep.subr.mxu0 0.0
    %225 = vmatpush1.msra.mxu0 0.0
    %226 = vmatprep.subr.mxu0 0.0
    %227 = vmatpush1.msra.mxu0 0.0
    %228 = vmatprep.subr.mxu0 0.0
    %229 = vmatpush1.msra.mxu0 0.0
    %230 = vmatprep.subr.mxu0 0.0
    %231 = vmatpush1.msra.mxu0 0.0
    %232 = vmatprep.subr.mxu0 0.0
    %233 = vmatpush1.msra.mxu0 0.0
    %234 = vmatprep.subr.mxu0 0.0
    %235 = vmatpush1.msra.mxu0 0.0
    %236 = vmatprep.subr.mxu0 0.0
    %237 = vmatpush1.msra.mxu0 0.0
    %238 = vmatprep.subr.mxu0 0.0
    %239 = vmatpush1.msra.mxu0 0.0
    %240 = vmatprep.subr.mxu0 0.0
    %241 = vmatpush1.msra.mxu0 0.0
    %242 = vmatprep.mubr.f32.mxu0 0.0
    %243 = vmatmul.mubr.f32.gmra.mrb[0].mxu0 %v176
    %v244 = vpop.f32.mrb[0].mxu0
    %v245 = vadd.f32 0.0, %v244
    %v246 = vpop.f32.mrb[0].mxu0
    %247 = vdwg.mxu0
    %v248 = vadd.f32 %v163, %v245
    %v249 = vxor.u32 %v248, 2147483648
    %v250 = vmul.f32 %v249, 1.442695
    %v251 = vpow.pop %v250
    %v252 = vadd.f32 %v251, 1.0
    %v253 = vrcp.pop %v252
    %v254 = vmul.f32 1.0, %v253
    %v255 = vtanh.pop %v248
    %v257 = vlaneseq
    %v258 = vshrl.u32 %v257, 7
    %v259 = vsub.s32 0, %v258
    %v260 = vrot.slane %v171, %v259
    %261 = vrot.lane.b32.xlu0 %v260, 32
    %v262 = vpop.permute.xlu0 %261
    %v264 = vmul.f32 %v254, %v262
    %266 = vrot.lane.b32.xlu0 %v255, 32
    %v267 = vpop.permute.xlu0 %266
    %v269 = vmul.f32 %v254, %v267
    %271 = vrot.lane.b32.xlu0 %v269, 32
    %v272 = vpop.permute.xlu0 %271
    %v274 = vadd.f32 %v264, %v272
    %v275 = vtanh.pop %v274
    %277 = vrot.lane.b32.xlu0 %v275, 32
    %v278 = vpop.permute.xlu0 %277
    %v280 = vmul.f32 %v254, %v278
    %vm281 = vcmp.eq.s32.totalorder %v173, 0
    %v282 = vlaneseq
    %v283 = vshrl.u32 %v282, 7
    %v284 = vsub.s32 0, %v283
    %v285 = vrot.slane %v280, %v284
    %v286 = vsel %vm281, %v285, 0.0
    %288 = vrot.lane.b32.xlu0 %v280, 64
    %v289 = vpop.permute.xlu0 %288
    %v290 = vsel %vm174, %v289, 0
    %292 = vmatprep.subr.mxu0 0.0
    %293 = vmatpush1.msra.mxu0 %v166
    %294 = vmatprep.subr.mxu0 0.0
    %295 = vmatpush1.msra.mxu0 %v167
    %296 = vmatprep.subr.mxu0 0.0
    %297 = vmatpush1.msra.mxu0 %v168
    %298 = vmatprep.subr.mxu0 0.0
    %299 = vmatpush1.msra.mxu0 %v169
    %300 = vmatprep.subr.mxu0 0.0
    %301 = vmatpush1.msra.mxu0 0.0
    %302 = vmatprep.subr.mxu0 0.0
    %303 = vmatpush1.msra.mxu0 0.0
    %304 = vmatprep.subr.mxu0 0.0
    %305 = vmatpush1.msra.mxu0 0.0
    %306 = vmatprep.subr.mxu0 0.0
    %307 = vmatpush1.msra.mxu0 0.0
    %308 = vmatprep.subr.mxu0 0.0
    %309 = vmatpush1.msra.mxu0 0.0
    %310 = vmatprep.subr.mxu0 0.0
    %311 = vmatpush1.msra.mxu0 0.0
    %312 = vmatprep.subr.mxu0 0.0
    %313 = vmatpush1.msra.mxu0 0.0
    %314 = vmatprep.subr.mxu0 0.0
    %315 = vmatpush1.msra.mxu0 0.0
    %316 = vmatprep.subr.mxu0 0.0
    %317 = vmatpush1.msra.mxu0 0.0
    %318 = vmatprep.subr.mxu0 0.0
    %319 = vmatpush1.msra.mxu0 0.0
    %320 = vmatprep.subr.mxu0 0.0
    %321 = vmatpush1.msra.mxu0 0.0
    %322 = vmatprep.subr.mxu0 0.0
    %323 = vmatpush1.msra.mxu0 0.0
    %324 = vmatprep.subr.mxu0 0.0
    %325 = vmatpush1.msra.mxu0 0.0
    %326 = vmatprep.subr.mxu0 0.0
    %327 = vmatpush1.msra.mxu0 0.0
    %328 = vmatprep.subr.mxu0 0.0
    %329 = vmatpush1.msra.mxu0 0.0
    %330 = vmatprep.subr.mxu0 0.0
    %331 = vmatpush1.msra.mxu0 0.0
    %332 = vmatprep.subr.mxu0 0.0
    %333 = vmatpush1.msra.mxu0 0.0
    %334 = vmatprep.subr.mxu0 0.0
    %335 = vmatpush1.msra.mxu0 0.0
    %336 = vmatprep.subr.mxu0 0.0
    %337 = vmatpush1.msra.mxu0 0.0
    %338 = vmatprep.subr.mxu0 0.0
    %339 = vmatpush1.msra.mxu0 0.0
    %340 = vmatprep.subr.mxu0 0.0
    %341 = vmatpush1.msra.mxu0 0.0
    %342 = vmatprep.subr.mxu0 0.0
    %343 = vmatpush1.msra.mxu0 0.0
    %344 = vmatprep.subr.mxu0 0.0
    %345 = vmatpush1.msra.mxu0 0.0
    %346 = vmatprep.subr.mxu0 0.0
    %347 = vmatpush1.msra.mxu0 0.0
    %348 = vmatprep.subr.mxu0 0.0
    %349 = vmatpush1.msra.mxu0 0.0
    %350 = vmatprep.subr.mxu0 0.0
    %351 = vmatpush1.msra.mxu0 0.0
    %352 = vmatprep.subr.mxu0 0.0
    %353 = vmatpush1.msra.mxu0 0.0
    %354 = vmatprep.subr.mxu0 0.0
    %355 = vmatpush1.msra.mxu0 0.0
    %356 = vmatprep.mubr.f32.mxu0 0.0
    %357 = vmatmul.mubr.f32.gmra.mrb[0].mxu0 %v290
    %v358 = vpop.f32.mrb[0].mxu0
    %v359 = vadd.f32 0.0, %v358
    %v360 = vpop.f32.mrb[0].mxu0
    %361 = vdwg.mxu0
    %v363 = vrot.slane %v359, 7
    %v365 = vadd.f32 %v163, %v363
    %v366 = vxor.u32 %v365, 2147483648
    %v367 = vmul.f32 %v366, 1.442695
    %v368 = vpow.pop %v367
    %v369 = vadd.f32 %v368, 1.0
    %v370 = vrcp.pop %v369
    %v371 = vmul.f32 1.0, %v370
    %v372 = vtanh.pop %v365
    %v374 = vrot.slane %v274, 7
    %v376 = vmul.f32 %v371, %v374
    %378 = vrot.lane.b32.xlu0 %v372, 32
    %v379 = vpop.permute.xlu0 %378
    %v381 = vmul.f32 %v371, %v379
    %383 = vrot.lane.b32.xlu0 %v381, 32
    %v384 = vpop.permute.xlu0 %383
    %v386 = vadd.f32 %v376, %v384
    %v387 = vtanh.pop %v386
    %389 = vrot.lane.b32.xlu0 %v387, 32
    %v390 = vpop.permute.xlu0 %389
    %v392 = vmul.f32 %v371, %v390
    %vm393 = vcmp.eq.s32.totalorder %v173, 1
    %v394 = vlaneseq
    %v395 = vshrl.u32 %v394, 7
    %v396 = vsub.s32 1, %v395
    %v397 = vrot.slane %v392, %v396
    %v398 = vsel %vm393, %v397, %v286
    %v400 = vrot.slane %v392, 1
    %401 = vrot.lane.b32.xlu0 %v400, 64
    %v402 = vpop.permute.xlu0 %401
    %v403 = vsel %vm174, %v402, 0
    %405 = vmatprep.subr.mxu0 0.0
    %406 = vmatpush1.msra.mxu0 %v166
    %407 = vmatprep.subr.mxu0 0.0
    %408 = vmatpush1.msra.mxu0 %v167
    %409 = vmatprep.subr.mxu0 0.0
    %410 = vmatpush1.msra.mxu0 %v168
    %411 = vmatprep.subr.mxu0 0.0
    %412 = vmatpush1.msra.mxu0 %v169
    %413 = vmatprep.subr.mxu0 0.0
    %414 = vmatpush1.msra.mxu0 0.0
    %415 = vmatprep.subr.mxu0 0.0
    %416 = vmatpush1.msra.mxu0 0.0
    %417 = vmatprep.subr.mxu0 0.0
    %418 = vmatpush1.msra.mxu0 0.0
    %419 = vmatprep.subr.mxu0 0.0
    %420 = vmatpush1.msra.mxu0 0.0
    %421 = vmatprep.subr.mxu0 0.0
    %422 = vmatpush1.msra.mxu0 0.0
    %423 = vmatprep.subr.mxu0 0.0
    %424 = vmatpush1.msra.mxu0 0.0
    %425 = vmatprep.subr.mxu0 0.0
    %426 = vmatpush1.msra.mxu0 0.0
    %427 = vmatprep.subr.mxu0 0.0
    %428 = vmatpush1.msra.mxu0 0.0
    %429 = vmatprep.subr.mxu0 0.0
    %430 = vmatpush1.msra.mxu0 0.0
    %431 = vmatprep.subr.mxu0 0.0
    %432 = vmatpush1.msra.mxu0 0.0
    %433 = vmatprep.subr.mxu0 0.0
    %434 = vmatpush1.msra.mxu0 0.0
    %435 = vmatprep.subr.mxu0 0.0
    %436 = vmatpush1.msra.mxu0 0.0
    %437 = vmatprep.subr.mxu0 0.0
    %438 = vmatpush1.msra.mxu0 0.0
    %439 = vmatprep.subr.mxu0 0.0
    %440 = vmatpush1.msra.mxu0 0.0
    %441 = vmatprep.subr.mxu0 0.0
    %442 = vmatpush1.msra.mxu0 0.0
    %443 = vmatprep.subr.mxu0 0.0
    %444 = vmatpush1.msra.mxu0 0.0
    %445 = vmatprep.subr.mxu0 0.0
    %446 = vmatpush1.msra.mxu0 0.0
    %447 = vmatprep.subr.mxu0 0.0
    %448 = vmatpush1.msra.mxu0 0.0
    %449 = vmatprep.subr.mxu0 0.0
    %450 = vmatpush1.msra.mxu0 0.0
    %451 = vmatprep.subr.mxu0 0.0
    %452 = vmatpush1.msra.mxu0 0.0
    %453 = vmatprep.subr.mxu0 0.0
    %454 = vmatpush1.msra.mxu0 0.0
    %455 = vmatprep.subr.mxu0 0.0
    %456 = vmatpush1.msra.mxu0 0.0
    %457 = vmatprep.subr.mxu0 0.0
    %458 = vmatpush1.msra.mxu0 0.0
    %459 = vmatprep.subr.mxu0 0.0
    %460 = vmatpush1.msra.mxu0 0.0
    %461 = vmatprep.subr.mxu0 0.0
    %462 = vmatpush1.msra.mxu0 0.0
    %463 = vmatprep.subr.mxu0 0.0
    %464 = vmatpush1.msra.mxu0 0.0
    %465 = vmatprep.subr.mxu0 0.0
    %466 = vmatpush1.msra.mxu0 0.0
    %467 = vmatprep.subr.mxu0 0.0
    %468 = vmatpush1.msra.mxu0 0.0
    %469 = vmatprep.mubr.f32.mxu0 0.0
    %470 = vmatmul.mubr.f32.gmra.mrb[0].mxu0 %v403
    %v471 = vpop.f32.mrb[0].mxu0
    %v472 = vadd.f32 0.0, %v471
    %v473 = vpop.f32.mrb[0].mxu0
    %474 = vdwg.mxu0
    %v476 = vrot.slane %v472, 6
    %v478 = vadd.f32 %v163, %v476
    %v479 = vxor.u32 %v478, 2147483648
    %v480 = vmul.f32 %v479, 1.442695
    %v481 = vpow.pop %v480
    %v482 = vadd.f32 %v481, 1.0
    %v483 = vrcp.pop %v482
    %v484 = vmul.f32 1.0, %v483
    %v485 = vtanh.pop %v478
    %v487 = vrot.slane %v386, 7
    %v489 = vmul.f32 %v484, %v487
    %491 = vrot.lane.b32.xlu0 %v485, 32
    %v492 = vpop.permute.xlu0 %491
    %v494 = vmul.f32 %v484, %v492
    %496 = vrot.lane.b32.xlu0 %v494, 32
    %v497 = vpop.permute.xlu0 %496
    %v499 = vadd.f32 %v489, %v497
    %v500 = vtanh.pop %v499
    %502 = vrot.lane.b32.xlu0 %v500, 32
    %v503 = vpop.permute.xlu0 %502
    %v505 = vmul.f32 %v484, %v503
    %vm506 = vcmp.eq.s32.totalorder %v173, 2
    %v507 = vlaneseq
    %v508 = vshrl.u32 %v507, 7
    %v509 = vsub.s32 2, %v508
    %v510 = vrot.slane %v505, %v509
    %v511 = vsel %vm506, %v510, %v398
    %v513 = vrot.slane %v505, 2
    %514 = vrot.lane.b32.xlu0 %v513, 64
    %v515 = vpop.permute.xlu0 %514
    %v516 = vsel %vm174, %v515, 0
    %518 = vmatprep.subr.mxu0 0.0
    %519 = vmatpush1.msra.mxu0 %v166
    %520 = vmatprep.subr.mxu0 0.0
    %521 = vmatpush1.msra.mxu0 %v167
    %522 = vmatprep.subr.mxu0 0.0
    %523 = vmatpush1.msra.mxu0 %v168
    %524 = vmatprep.subr.mxu0 0.0
    %525 = vmatpush1.msra.mxu0 %v169
    %526 = vmatprep.subr.mxu0 0.0
    %527 = vmatpush1.msra.mxu0 0.0
    %528 = vmatprep.subr.mxu0 0.0
    %529 = vmatpush1.msra.mxu0 0.0
    %530 = vmatprep.subr.mxu0 0.0
    %531 = vmatpush1.msra.mxu0 0.0
    %532 = vmatprep.subr.mxu0 0.0
    %533 = vmatpush1.msra.mxu0 0.0
    %534 = vmatprep.subr.mxu0 0.0
    %535 = vmatpush1.msra.mxu0 0.0
    %536 = vmatprep.subr.mxu0 0.0
    %537 = vmatpush1.msra.mxu0 0.0
    %538 = vmatprep.subr.mxu0 0.0
    %539 = vmatpush1.msra.mxu0 0.0
    %540 = vmatprep.subr.mxu0 0.0
    %541 = vmatpush1.msra.mxu0 0.0
    %542 = vmatprep.subr.mxu0 0.0
    %543 = vmatpush1.msra.mxu0 0.0
    %544 = vmatprep.subr.mxu0 0.0
    %545 = vmatpush1.msra.mxu0 0.0
    %546 = vmatprep.subr.mxu0 0.0
    %547 = vmatpush1.msra.mxu0 0.0
    %548 = vmatprep.subr.mxu0 0.0
    %549 = vmatpush1.msra.mxu0 0.0
    %550 = vmatprep.subr.mxu0 0.0
    %551 = vmatpush1.msra.mxu0 0.0
    %552 = vmatprep.subr.mxu0 0.0
    %553 = vmatpush1.msra.mxu0 0.0
    %554 = vmatprep.subr.mxu0 0.0
    %555 = vmatpush1.msra.mxu0 0.0
    %556 = vmatprep.subr.mxu0 0.0
    %557 = vmatpush1.msra.mxu0 0.0
    %558 = vmatprep.subr.mxu0 0.0
    %559 = vmatpush1.msra.mxu0 0.0
    %560 = vmatprep.subr.mxu0 0.0
    %561 = vmatpush1.msra.mxu0 0.0
    %562 = vmatprep.subr.mxu0 0.0
    %563 = vmatpush1.msra.mxu0 0.0
    %564 = vmatprep.subr.mxu0 0.0
    %565 = vmatpush1.msra.mxu0 0.0
    %566 = vmatprep.subr.mxu0 0.0
    %567 = vmatpush1.msra.mxu0 0.0
    %568 = vmatprep.subr.mxu0 0.0
    %569 = vmatpush1.msra.mxu0 0.0
    %570 = vmatprep.subr.mxu0 0.0
    %571 = vmatpush1.msra.mxu0 0.0
    %572 = vmatprep.subr.mxu0 0.0
    %573 = vmatpush1.msra.mxu0 0.0
    %574 = vmatprep.subr.mxu0 0.0
    %575 = vmatpush1.msra.mxu0 0.0
    %576 = vmatprep.subr.mxu0 0.0
    %577 = vmatpush1.msra.mxu0 0.0
    %578 = vmatprep.subr.mxu0 0.0
    %579 = vmatpush1.msra.mxu0 0.0
    %580 = vmatprep.subr.mxu0 0.0
    %581 = vmatpush1.msra.mxu0 0.0
    %582 = vmatprep.mubr.f32.mxu0 0.0
    %583 = vmatmul.mubr.f32.gmra.mrb[0].mxu0 %v516
    %v584 = vpop.f32.mrb[0].mxu0
    %v585 = vadd.f32 0.0, %v584
    %v586 = vpop.f32.mrb[0].mxu0
    %587 = vdwg.mxu0
    %v589 = vrot.slane %v585, 5
    %v591 = vadd.f32 %v163, %v589
    %v592 = vxor.u32 %v591, 2147483648
    %v593 = vmul.f32 %v592, 1.442695
    %v594 = vpow.pop %v593
    %v595 = vadd.f32 %v594, 1.0
    %v596 = vrcp.pop %v595
    %v597 = vmul.f32 1.0, %v596
    %v598 = vtanh.pop %v591
    %v600 = vrot.slane %v499, 7
    %v602 = vmul.f32 %v597, %v600
    %604 = vrot.lane.b32.xlu0 %v598, 32
    %v605 = vpop.permute.xlu0 %604
    %v607 = vmul.f32 %v597, %v605
    %609 = vrot.lane.b32.xlu0 %v607, 32
    %v610 = vpop.permute.xlu0 %609
    %v612 = vadd.f32 %v602, %v610
    %v613 = vtanh.pop %v612
    %615 = vrot.lane.b32.xlu0 %v613, 32
    %v616 = vpop.permute.xlu0 %615
    %v618 = vmul.f32 %v597, %v616
    %vm619 = vcmp.eq.s32.totalorder %v173, 3
    %v620 = vlaneseq
    %v621 = vshrl.u32 %v620, 7
    %v622 = vsub.s32 3, %v621
    %v623 = vrot.slane %v618, %v622
    %v624 = vsel %vm619, %v623, %v511
    %v626 = vrot.slane %v618, 3
    %627 = vrot.lane.b32.xlu0 %v626, 64
    %v628 = vpop.permute.xlu0 %627
    %v629 = vsel %vm174, %v628, 0
    %631 = vmatprep.subr.mxu0 0.0
    %632 = vmatpush1.msra.mxu0 %v166
    %633 = vmatprep.subr.mxu0 0.0
    %634 = vmatpush1.msra.mxu0 %v167
    %635 = vmatprep.subr.mxu0 0.0
    %636 = vmatpush1.msra.mxu0 %v168
    %637 = vmatprep.subr.mxu0 0.0
    %638 = vmatpush1.msra.mxu0 %v169
    %639 = vmatprep.subr.mxu0 0.0
    %640 = vmatpush1.msra.mxu0 0.0
    %641 = vmatprep.subr.mxu0 0.0
    %642 = vmatpush1.msra.mxu0 0.0
    %643 = vmatprep.subr.mxu0 0.0
    %644 = vmatpush1.msra.mxu0 0.0
    %645 = vmatprep.subr.mxu0 0.0
    %646 = vmatpush1.msra.mxu0 0.0
    %647 = vmatprep.subr.mxu0 0.0
    %648 = vmatpush1.msra.mxu0 0.0
    %649 = vmatprep.subr.mxu0 0.0
    %650 = vmatpush1.msra.mxu0 0.0
    %651 = vmatprep.subr.mxu0 0.0
    %652 = vmatpush1.msra.mxu0 0.0
    %653 = vmatprep.subr.mxu0 0.0
    %654 = vmatpush1.msra.mxu0 0.0
    %655 = vmatprep.subr.mxu0 0.0
    %656 = vmatpush1.msra.mxu0 0.0
    %657 = vmatprep.subr.mxu0 0.0
    %658 = vmatpush1.msra.mxu0 0.0
    %659 = vmatprep.subr.mxu0 0.0
    %660 = vmatpush1.msra.mxu0 0.0
    %661 = vmatprep.subr.mxu0 0.0
    %662 = vmatpush1.msra.mxu0 0.0
    %663 = vmatprep.subr.mxu0 0.0
    %664 = vmatpush1.msra.mxu0 0.0
    %665 = vmatprep.subr.mxu0 0.0
    %666 = vmatpush1.msra.mxu0 0.0
    %667 = vmatprep.subr.mxu0 0.0
    %668 = vmatpush1.msra.mxu0 0.0
    %669 = vmatprep.subr.mxu0 0.0
    %670 = vmatpush1.msra.mxu0 0.0
    %671 = vmatprep.subr.mxu0 0.0
    %672 = vmatpush1.msra.mxu0 0.0
    %673 = vmatprep.subr.mxu0 0.0
    %674 = vmatpush1.msra.mxu0 0.0
    %675 = vmatprep.subr.mxu0 0.0
    %676 = vmatpush1.msra.mxu0 0.0
    %677 = vmatprep.subr.mxu0 0.0
    %678 = vmatpush1.msra.mxu0 0.0
    %679 = vmatprep.subr.mxu0 0.0
    %680 = vmatpush1.msra.mxu0 0.0
    %681 = vmatprep.subr.mxu0 0.0
    %682 = vmatpush1.msra.mxu0 0.0
    %683 = vmatprep.subr.mxu0 0.0
    %684 = vmatpush1.msra.mxu0 0.0
    %685 = vmatprep.subr.mxu0 0.0
    %686 = vmatpush1.msra.mxu0 0.0
    %687 = vmatprep.subr.mxu0 0.0
    %688 = vmatpush1.msra.mxu0 0.0
    %689 = vmatprep.subr.mxu0 0.0
    %690 = vmatpush1.msra.mxu0 0.0
    %691 = vmatprep.subr.mxu0 0.0
    %692 = vmatpush1.msra.mxu0 0.0
    %693 = vmatprep.subr.mxu0 0.0
    %694 = vmatpush1.msra.mxu0 0.0
    %695 = vmatprep.mubr.f32.mxu0 0.0
    %696 = vmatmul.mubr.f32.gmra.mrb[0].mxu0 %v629
    %v697 = vpop.f32.mrb[0].mxu0
    %v698 = vadd.f32 0.0, %v697
    %v699 = vpop.f32.mrb[0].mxu0
    %700 = vdwg.mxu0
    %v702 = vrot.slane %v698, 4
    %v704 = vadd.f32 %v163, %v702
    %v705 = vxor.u32 %v704, 2147483648
    %v706 = vmul.f32 %v705, 1.442695
    %v707 = vpow.pop %v706
    %v708 = vadd.f32 %v707, 1.0
    %v709 = vrcp.pop %v708
    %v710 = vmul.f32 1.0, %v709
    %v711 = vtanh.pop %v704
    %v713 = vrot.slane %v612, 7
    %v715 = vmul.f32 %v710, %v713
    %717 = vrot.lane.b32.xlu0 %v711, 32
    %v718 = vpop.permute.xlu0 %717
    %v720 = vmul.f32 %v710, %v718
    %722 = vrot.lane.b32.xlu0 %v720, 32
    %v723 = vpop.permute.xlu0 %722
    %v725 = vadd.f32 %v715, %v723
    %v726 = vtanh.pop %v725
    %728 = vrot.lane.b32.xlu0 %v726, 32
    %v729 = vpop.permute.xlu0 %728
    %v731 = vmul.f32 %v710, %v729
    %vm732 = vcmp.eq.s32.totalorder %v173, 4
    %v733 = vlaneseq
    %v734 = vshrl.u32 %v733, 7
    %v735 = vsub.s32 4, %v734
    %v736 = vrot.slane %v731, %v735
    %v737 = vsel %vm732, %v736, %v624
    %v739 = vrot.slane %v731, 4
    %740 = vrot.lane.b32.xlu0 %v739, 64
    %v741 = vpop.permute.xlu0 %740
    %v742 = vsel %vm174, %v741, 0
    %744 = vmatprep.subr.mxu0 0.0
    %745 = vmatpush1.msra.mxu0 %v166
    %746 = vmatprep.subr.mxu0 0.0
    %747 = vmatpush1.msra.mxu0 %v167
    %748 = vmatprep.subr.mxu0 0.0
    %749 = vmatpush1.msra.mxu0 %v168
    %750 = vmatprep.subr.mxu0 0.0
    %751 = vmatpush1.msra.mxu0 %v169
    %752 = vmatprep.subr.mxu0 0.0
    %753 = vmatpush1.msra.mxu0 0.0
    %754 = vmatprep.subr.mxu0 0.0
    %755 = vmatpush1.msra.mxu0 0.0
    %756 = vmatprep.subr.mxu0 0.0
    %757 = vmatpush1.msra.mxu0 0.0
    %758 = vmatprep.subr.mxu0 0.0
    %759 = vmatpush1.msra.mxu0 0.0
    %760 = vmatprep.subr.mxu0 0.0
    %761 = vmatpush1.msra.mxu0 0.0
    %762 = vmatprep.subr.mxu0 0.0
    %763 = vmatpush1.msra.mxu0 0.0
    %764 = vmatprep.subr.mxu0 0.0
    %765 = vmatpush1.msra.mxu0 0.0
    %766 = vmatprep.subr.mxu0 0.0
    %767 = vmatpush1.msra.mxu0 0.0
    %768 = vmatprep.subr.mxu0 0.0
    %769 = vmatpush1.msra.mxu0 0.0
    %770 = vmatprep.subr.mxu0 0.0
    %771 = vmatpush1.msra.mxu0 0.0
    %772 = vmatprep.subr.mxu0 0.0
    %773 = vmatpush1.msra.mxu0 0.0
    %774 = vmatprep.subr.mxu0 0.0
    %775 = vmatpush1.msra.mxu0 0.0
    %776 = vmatprep.subr.mxu0 0.0
    %777 = vmatpush1.msra.mxu0 0.0
    %778 = vmatprep.subr.mxu0 0.0
    %779 = vmatpush1.msra.mxu0 0.0
    %780 = vmatprep.subr.mxu0 0.0
    %781 = vmatpush1.msra.mxu0 0.0
    %782 = vmatprep.subr.mxu0 0.0
    %783 = vmatpush1.msra.mxu0 0.0
    %784 = vmatprep.subr.mxu0 0.0
    %785 = vmatpush1.msra.mxu0 0.0
    %786 = vmatprep.subr.mxu0 0.0
    %787 = vmatpush1.msra.mxu0 0.0
    %788 = vmatprep.subr.mxu0 0.0
    %789 = vmatpush1.msra.mxu0 0.0
    %790 = vmatprep.subr.mxu0 0.0
    %791 = vmatpush1.msra.mxu0 0.0
    %792 = vmatprep.subr.mxu0 0.0
    %793 = vmatpush1.msra.mxu0 0.0
    %794 = vmatprep.subr.mxu0 0.0
    %795 = vmatpush1.msra.mxu0 0.0
    %796 = vmatprep.subr.mxu0 0.0
    %797 = vmatpush1.msra.mxu0 0.0
    %798 = vmatprep.subr.mxu0 0.0
    %799 = vmatpush1.msra.mxu0 0.0
    %800 = vmatprep.subr.mxu0 0.0
    %801 = vmatpush1.msra.mxu0 0.0
    %802 = vmatprep.subr.mxu0 0.0
    %803 = vmatpush1.msra.mxu0 0.0
    %804 = vmatprep.subr.mxu0 0.0
    %805 = vmatpush1.msra.mxu0 0.0
    %806 = vmatprep.subr.mxu0 0.0
    %807 = vmatpush1.msra.mxu0 0.0
    %808 = vmatprep.mubr.f32.mxu0 0.0
    %809 = vmatmul.mubr.f32.gmra.mrb[0].mxu0 %v742
    %v810 = vpop.f32.mrb[0].mxu0
    %v811 = vadd.f32 0.0, %v810
    %v812 = vpop.f32.mrb[0].mxu0
    %813 = vdwg.mxu0
    %v815 = vrot.slane %v811, 3
    %v817 = vadd.f32 %v163, %v815
    %v818 = vxor.u32 %v817, 2147483648
    %v819 = vmul.f32 %v818, 1.442695
    %v820 = vpow.pop %v819
    %v821 = vadd.f32 %v820, 1.0
    %v822 = vrcp.pop %v821
    %v823 = vmul.f32 1.0, %v822
    %v824 = vtanh.pop %v817
    %v826 = vrot.slane %v725, 7
    %v828 = vmul.f32 %v823, %v826
    %830 = vrot.lane.b32.xlu0 %v824, 32
    %v831 = vpop.permute.xlu0 %830
    %v833 = vmul.f32 %v823, %v831
    %835 = vrot.lane.b32.xlu0 %v833, 32
    %v836 = vpop.permute.xlu0 %835
    %v838 = vadd.f32 %v828, %v836
    %v839 = vtanh.pop %v838
    %841 = vrot.lane.b32.xlu0 %v839, 32
    %v842 = vpop.permute.xlu0 %841
    %v844 = vmul.f32 %v823, %v842
    %vm845 = vcmp.eq.s32.totalorder %v173, 5
    %v846 = vlaneseq
    %v847 = vshrl.u32 %v846, 7
    %v848 = vsub.s32 5, %v847
    %v849 = vrot.slane %v844, %v848
    %v850 = vsel %vm845, %v849, %v737
    %v852 = vrot.slane %v844, 5
    %853 = vrot.lane.b32.xlu0 %v852, 64
    %v854 = vpop.permute.xlu0 %853
    %v855 = vsel %vm174, %v854, 0
    %857 = vmatprep.subr.mxu0 0.0
    %858 = vmatpush1.msra.mxu0 %v166
    %859 = vmatprep.subr.mxu0 0.0
    %860 = vmatpush1.msra.mxu0 %v167
    %861 = vmatprep.subr.mxu0 0.0
    %862 = vmatpush1.msra.mxu0 %v168
    %863 = vmatprep.subr.mxu0 0.0
    %864 = vmatpush1.msra.mxu0 %v169
    %865 = vmatprep.subr.mxu0 0.0
    %866 = vmatpush1.msra.mxu0 0.0
    %867 = vmatprep.subr.mxu0 0.0
    %868 = vmatpush1.msra.mxu0 0.0
    %869 = vmatprep.subr.mxu0 0.0
    %870 = vmatpush1.msra.mxu0 0.0
    %871 = vmatprep.subr.mxu0 0.0
    %872 = vmatpush1.msra.mxu0 0.0
    %873 = vmatprep.subr.mxu0 0.0
    %874 = vmatpush1.msra.mxu0 0.0
    %875 = vmatprep.subr.mxu0 0.0
    %876 = vmatpush1.msra.mxu0 0.0
    %877 = vmatprep.subr.mxu0 0.0
    %878 = vmatpush1.msra.mxu0 0.0
    %879 = vmatprep.subr.mxu0 0.0
    %880 = vmatpush1.msra.mxu0 0.0
    %881 = vmatprep.subr.mxu0 0.0
    %882 = vmatpush1.msra.mxu0 0.0
    %883 = vmatprep.subr.mxu0 0.0
    %884 = vmatpush1.msra.mxu0 0.0
    %885 = vmatprep.subr.mxu0 0.0
    %886 = vmatpush1.msra.mxu0 0.0
    %887 = vmatprep.subr.mxu0 0.0
    %888 = vmatpush1.msra.mxu0 0.0
    %889 = vmatprep.subr.mxu0 0.0
    %890 = vmatpush1.msra.mxu0 0.0
    %891 = vmatprep.subr.mxu0 0.0
    %892 = vmatpush1.msra.mxu0 0.0
    %893 = vmatprep.subr.mxu0 0.0
    %894 = vmatpush1.msra.mxu0 0.0
    %895 = vmatprep.subr.mxu0 0.0
    %896 = vmatpush1.msra.mxu0 0.0
    %897 = vmatprep.subr.mxu0 0.0
    %898 = vmatpush1.msra.mxu0 0.0
    %899 = vmatprep.subr.mxu0 0.0
    %900 = vmatpush1.msra.mxu0 0.0
    %901 = vmatprep.subr.mxu0 0.0
    %902 = vmatpush1.msra.mxu0 0.0
    %903 = vmatprep.subr.mxu0 0.0
    %904 = vmatpush1.msra.mxu0 0.0
    %905 = vmatprep.subr.mxu0 0.0
    %906 = vmatpush1.msra.mxu0 0.0
    %907 = vmatprep.subr.mxu0 0.0
    %908 = vmatpush1.msra.mxu0 0.0
    %909 = vmatprep.subr.mxu0 0.0
    %910 = vmatpush1.msra.mxu0 0.0
    %911 = vmatprep.subr.mxu0 0.0
    %912 = vmatpush1.msra.mxu0 0.0
    %913 = vmatprep.subr.mxu0 0.0
    %914 = vmatpush1.msra.mxu0 0.0
    %915 = vmatprep.subr.mxu0 0.0
    %916 = vmatpush1.msra.mxu0 0.0
    %917 = vmatprep.subr.mxu0 0.0
    %918 = vmatpush1.msra.mxu0 0.0
    %919 = vmatprep.subr.mxu0 0.0
    %920 = vmatpush1.msra.mxu0 0.0
    %921 = vmatprep.mubr.f32.mxu0 0.0
    %922 = vmatmul.mubr.f32.gmra.mrb[0].mxu0 %v855
    %v923 = vpop.f32.mrb[0].mxu0
    %v924 = vadd.f32 0.0, %v923
    %v925 = vpop.f32.mrb[0].mxu0
    %926 = vdwg.mxu0
    %v928 = vrot.slane %v924, 2
    %v930 = vadd.f32 %v163, %v928
    %v931 = vxor.u32 %v930, 2147483648
    %v932 = vmul.f32 %v931, 1.442695
    %v933 = vpow.pop %v932
    %v934 = vadd.f32 %v933, 1.0
    %v935 = vrcp.pop %v934
    %v936 = vmul.f32 1.0, %v935
    %v937 = vtanh.pop %v930
    %v939 = vrot.slane %v838, 7
    %v941 = vmul.f32 %v936, %v939
    %943 = vrot.lane.b32.xlu0 %v937, 32
    %v944 = vpop.permute.xlu0 %943
    %v946 = vmul.f32 %v936, %v944
    %948 = vrot.lane.b32.xlu0 %v946, 32
    %v949 = vpop.permute.xlu0 %948
    %v951 = vadd.f32 %v941, %v949
    %v952 = vtanh.pop %v951
    %954 = vrot.lane.b32.xlu0 %v952, 32
    %v955 = vpop.permute.xlu0 %954
    %v957 = vmul.f32 %v936, %v955
    %vm958 = vcmp.eq.s32.totalorder %v173, 6
    %v959 = vlaneseq
    %v960 = vshrl.u32 %v959, 7
    %v961 = vsub.s32 6, %v960
    %v962 = vrot.slane %v957, %v961
    %v963 = vsel %vm958, %v962, %v850
    %v965 = vrot.slane %v957, 6
    %966 = vrot.lane.b32.xlu0 %v965, 64
    %v967 = vpop.permute.xlu0 %966
    %v968 = vsel %vm174, %v967, 0
    %970 = vmatprep.subr.mxu0 0.0
    %971 = vmatpush1.msra.mxu0 %v166
    %972 = vmatprep.subr.mxu0 0.0
    %973 = vmatpush1.msra.mxu0 %v167
    %974 = vmatprep.subr.mxu0 0.0
    %975 = vmatpush1.msra.mxu0 %v168
    %976 = vmatprep.subr.mxu0 0.0
    %977 = vmatpush1.msra.mxu0 %v169
    %978 = vmatprep.subr.mxu0 0.0
    %979 = vmatpush1.msra.mxu0 0.0
    %980 = vmatprep.subr.mxu0 0.0
    %981 = vmatpush1.msra.mxu0 0.0
    %982 = vmatprep.subr.mxu0 0.0
    %983 = vmatpush1.msra.mxu0 0.0
    %984 = vmatprep.subr.mxu0 0.0
    %985 = vmatpush1.msra.mxu0 0.0
    %986 = vmatprep.subr.mxu0 0.0
    %987 = vmatpush1.msra.mxu0 0.0
    %988 = vmatprep.subr.mxu0 0.0
    %989 = vmatpush1.msra.mxu0 0.0
    %990 = vmatprep.subr.mxu0 0.0
    %991 = vmatpush1.msra.mxu0 0.0
    %992 = vmatprep.subr.mxu0 0.0
    %993 = vmatpush1.msra.mxu0 0.0
    %994 = vmatprep.subr.mxu0 0.0
    %995 = vmatpush1.msra.mxu0 0.0
    %996 = vmatprep.subr.mxu0 0.0
    %997 = vmatpush1.msra.mxu0 0.0
    %998 = vmatprep.subr.mxu0 0.0
    %999 = vmatpush1.msra.mxu0 0.0
    %1000 = vmatprep.subr.mxu0 0.0
    %1001 = vmatpush1.msra.mxu0 0.0
    %1002 = vmatprep.subr.mxu0 0.0
    %1003 = vmatpush1.msra.mxu0 0.0
    %1004 = vmatprep.subr.mxu0 0.0
    %1005 = vmatpush1.msra.mxu0 0.0
    %1006 = vmatprep.subr.mxu0 0.0
    %1007 = vmatpush1.msra.mxu0 0.0
    %1008 = vmatprep.subr.mxu0 0.0
    %1009 = vmatpush1.msra.mxu0 0.0
    %1010 = vmatprep.subr.mxu0 0.0
    %1011 = vmatpush1.msra.mxu0 0.0
    %1012 = vmatprep.subr.mxu0 0.0
    %1013 = vmatpush1.msra.mxu0 0.0
    %1014 = vmatprep.subr.mxu0 0.0
    %1015 = vmatpush1.msra.mxu0 0.0
    %1016 = vmatprep.subr.mxu0 0.0
    %1017 = vmatpush1.msra.mxu0 0.0
    %1018 = vmatprep.subr.mxu0 0.0
    %1019 = vmatpush1.msra.mxu0 0.0
    %1020 = vmatprep.subr.mxu0 0.0
    %1021 = vmatpush1.msra.mxu0 0.0
    %1022 = vmatprep.subr.mxu0 0.0
    %1023 = vmatpush1.msra.mxu0 0.0
    %1024 = vmatprep.subr.mxu0 0.0
    %1025 = vmatpush1.msra.mxu0 0.0
    %1026 = vmatprep.subr.mxu0 0.0
    %1027 = vmatpush1.msra.mxu0 0.0
    %1028 = vmatprep.subr.mxu0 0.0
    %1029 = vmatpush1.msra.mxu0 0.0
    %1030 = vmatprep.subr.mxu0 0.0
    %1031 = vmatpush1.msra.mxu0 0.0
    %1032 = vmatprep.subr.mxu0 0.0
    %1033 = vmatpush1.msra.mxu0 0.0
    %1034 = vmatprep.mubr.f32.mxu0 0.0
    %1035 = vmatmul.mubr.f32.gmra.mrb[0].mxu0 %v968
    %v1036 = vpop.f32.mrb[0].mxu0
    %v1037 = vadd.f32 0.0, %v1036
    %v1038 = vpop.f32.mrb[0].mxu0
    %1039 = vdwg.mxu0
    %v1041 = vrot.slane %v1037, 1
    %v1043 = vadd.f32 %v163, %v1041
    %v1044 = vxor.u32 %v1043, 2147483648
    %v1045 = vmul.f32 %v1044, 1.442695
    %v1046 = vpow.pop %v1045
    %v1047 = vadd.f32 %v1046, 1.0
    %v1048 = vrcp.pop %v1047
    %v1049 = vmul.f32 1.0, %v1048
    %v1050 = vtanh.pop %v1043
    %v1052 = vrot.slane %v951, 7
    %v1054 = vmul.f32 %v1049, %v1052
    %1056 = vrot.lane.b32.xlu0 %v1050, 32
    %v1057 = vpop.permute.xlu0 %1056
    %v1059 = vmul.f32 %v1049, %v1057
    %1061 = vrot.lane.b32.xlu0 %v1059, 32
    %v1062 = vpop.permute.xlu0 %1061
    %v1064 = vadd.f32 %v1054, %v1062
    %v1065 = vtanh.pop %v1064
    %1067 = vrot.lane.b32.xlu0 %v1065, 32
    %v1068 = vpop.permute.xlu0 %1067
    %v1070 = vmul.f32 %v1049, %v1068
    %vm1071 = vcmp.eq.s32.totalorder %v173, 7
    %v1072 = vlaneseq
    %v1073 = vshrl.u32 %v1072, 7
    %v1074 = vsub.s32 7, %v1073
    %v1075 = vrot.slane %v1070, %v1074
    %v1076 = vsel %vm1071, %v1075, %v963
    %v1077 = vld [vmem:[#allocation7] sm:$0xff]
    %v1078 = vld [vmem:[#allocation7 + $0x8] sm:$0xff]
    %v1079 = vld [vmem:[#allocation7 + $0x10] sm:$0xff]
    %v1080 = vld [vmem:[#allocation7 + $0x18] sm:$0xff]
    %v1081 = vld [vmem:[%s7] sm:$0x1]
    %v1083 = vlaneseq
    %v1084 = vshrl.u32 %v1083, 7
    %v1085 = vsub.s32 0, %v1084
    %v1086 = vrot.slane %v1081, %v1085
    %1089 = vrot.lane.b32.xlu0 %v1076, 64
    %v1090 = vpop.permute.xlu0 %1089
    %v1091 = vsel %vm174, %v1090, 0
    %1093 = vmatprep.subr.mxu0 0.0
    %1094 = vmatpush1.msra.mxu0 %v1077
    %1095 = vmatprep.subr.mxu0 0.0
    %1096 = vmatpush1.msra.mxu0 %v1078
    %1097 = vmatprep.subr.mxu0 0.0
    %1098 = vmatpush1.msra.mxu0 %v1079
    %1099 = vmatprep.subr.mxu0 0.0
    %1100 = vmatpush1.msra.mxu0 %v1080
    %1101 = vmatprep.subr.mxu0 0.0
    %1102 = vmatpush1.msra.mxu0 0.0
    %1103 = vmatprep.subr.mxu0 0.0
    %1104 = vmatpush1.msra.mxu0 0.0
    %1105 = vmatprep.subr.mxu0 0.0
    %1106 = vmatpush1.msra.mxu0 0.0
    %1107 = vmatprep.subr.mxu0 0.0
    %1108 = vmatpush1.msra.mxu0 0.0
    %1109 = vmatprep.subr.mxu0 0.0
    %1110 = vmatpush1.msra.mxu0 0.0
    %1111 = vmatprep.subr.mxu0 0.0
    %1112 = vmatpush1.msra.mxu0 0.0
    %1113 = vmatprep.subr.mxu0 0.0
    %1114 = vmatpush1.msra.mxu0 0.0
    %1115 = vmatprep.subr.mxu0 0.0
    %1116 = vmatpush1.msra.mxu0 0.0
    %1117 = vmatprep.subr.mxu0 0.0
    %1118 = vmatpush1.msra.mxu0 0.0
    %1119 = vmatprep.subr.mxu0 0.0
    %1120 = vmatpush1.msra.mxu0 0.0
    %1121 = vmatprep.subr.mxu0 0.0
    %1122 = vmatpush1.msra.mxu0 0.0
    %1123 = vmatprep.subr.mxu0 0.0
    %1124 = vmatpush1.msra.mxu0 0.0
    %1125 = vmatprep.subr.mxu0 0.0
    %1126 = vmatpush1.msra.mxu0 0.0
    %1127 = vmatprep.subr.mxu0 0.0
    %1128 = vmatpush1.msra.mxu0 0.0
    %1129 = vmatprep.subr.mxu0 0.0
    %1130 = vmatpush1.msra.mxu0 0.0
    %1131 = vmatprep.subr.mxu0 0.0
    %1132 = vmatpush1.msra.mxu0 0.0
    %1133 = vmatprep.subr.mxu0 0.0
    %1134 = vmatpush1.msra.mxu0 0.0
    %1135 = vmatprep.subr.mxu0 0.0
    %1136 = vmatpush1.msra.mxu0 0.0
    %1137 = vmatprep.subr.mxu0 0.0
    %1138 = vmatpush1.msra.mxu0 0.0
    %1139 = vmatprep.subr.mxu0 0.0
    %1140 = vmatpush1.msra.mxu0 0.0
    %1141 = vmatprep.subr.mxu0 0.0
    %1142 = vmatpush1.msra.mxu0 0.0
    %1143 = vmatprep.subr.mxu0 0.0
    %1144 = vmatpush1.msra.mxu0 0.0
    %1145 = vmatprep.subr.mxu0 0.0
    %1146 = vmatpush1.msra.mxu0 0.0
    %1147 = vmatprep.subr.mxu0 0.0
    %1148 = vmatpush1.msra.mxu0 0.0
    %1149 = vmatprep.subr.mxu0 0.0
    %1150 = vmatpush1.msra.mxu0 0.0
    %1151 = vmatprep.subr.mxu0 0.0
    %1152 = vmatpush1.msra.mxu0 0.0
    %1153 = vmatprep.subr.mxu0 0.0
    %1154 = vmatpush1.msra.mxu0 0.0
    %1155 = vmatprep.subr.mxu0 0.0
    %1156 = vmatpush1.msra.mxu0 0.0
    %1157 = vmatprep.mubr.f32.mxu0 0.0
    %1158 = vmatmul.mubr.f32.gmra.mrb[0].mxu0 %v1091
    %v1159 = vpop.f32.mrb[0].mxu0
    %v1160 = vadd.f32 %v1086, %v1159
    %v1161 = vpop.f32.mrb[0].mxu0
    %1162 = vdwg.mxu0
    %v1163 = vlaneseq
    %v1164 = vand.u32 %v1163, 127
    %vm1165 = vcmp.lt.s32.totalorder %v1164, 2
    %v1166 = vxor.u32 %v1160, 2147483648
    %v1167 = vmul.f32 %v1166, 1.442695
    %v1168 = vpow.pop %v1167
    %v1169 = vadd.f32 %v1168, 1.0
    %v1170 = vrcp.pop %v1169
    %v1171 = vmul.f32 1.0, %v1170
    %v1172 = vsel %vm1165, %v1171, %v1160
    %1173 = vst [vmem:[%s8] sm:$0xff] %v1172
    // Predicated region
    $region50: #{acnet_forward.1} parent=1 // pred_check
      _
    $region51: #{acnet_forward.1} parent=1 // pred_check_branch
      %1175 = sbr.rel (0) target = $region53
    $region52: #{acnet_forward.1} parent=1 // pred_region
      _
    $region53: #{acnet_forward.1} parent=1 // pred_fallthru
      _
    // Predicated region
    $region54: #{acnet_forward.1} parent=1 // pred_check
      _
    $region55: #{acnet_forward.1} parent=1 // pred_check_branch
      %1177 = sbr.rel (0) target = $region57
    $region56: #{acnet_forward.1} parent=1 // pred_region
      _
    $region57: #{acnet_forward.1} parent=1 // pred_fallthru
      _
    %1178 = vsyncpa [#allocation3], 1
    %1179 = vsyncpa [#allocation5], 1
    %1180 = vsyncpa [#allocation8], 1

</llo_original>
